<compile_context>
chip_gen: v7x
topology: tpu7x:2x2x1
jax: 0.10.0
libtpu: 0.0.40
codegen_flags: <defaults>
</compile_context>

<pallas_src>
import functools

import numpy as np
import jax
import jax.numpy as jnp
from jax import lax
from jax.experimental import pallas as pl
from jax.experimental.pallas import tpu as pltpu

LN = 128  # lane-panel width; every operand / intermediate is a [rows, 128] slab


# ------------------------------ lane layout ----------------------------------


def _lane_layout(cin, cout, enc):
    """Static lane offsets shared by init_params, the wrapper and the kernel."""
    pf = 4 * cin
    lay = dict(
        pf=pf,
        # xp_aug input lanes: [patch pixels | e | 1 | 0...]
        in_xp=0, in_e=pf, in_one=pf + enc,
        # stage-1 output lanes: [x_enc | e | 1 | 0...]
        s1_xenc=0, s1_e=enc, s1_one=2 * enc,
        # stage-2 output (core_f) lanes: [y1 | y2 | y3 | e | 1 | z1 | z2 | 0...]
        f_y1=0, f_y2=cout, f_y3=2 * cout,
        f_e=3 * cout, f_one=3 * cout + enc,
        f_z1=3 * cout + enc + 1, f_z2=3 * cout + 2 * enc + 1,
        f_zend=3 * cout + 3 * enc + 1,
        # stage-3 output lanes: [y1_enc | y2_enc | y3_enc | 0...]
        b_h1=0, b_h2=enc, b_h3=2 * enc,
        # output slab lanes: [x_patch | y1_ | y2_ | z_sum | 0...]
        o_xp=0, o_y1=pf, o_y2=pf + cout, o_z=pf + 2 * cout,
        o_end=pf + 2 * cout + enc,
    )
    assert lay["in_one"] + 1 <= LN
    assert lay["s1_one"] + 1 <= LN
    assert lay["f_zend"] <= LN
    assert 3 * enc <= LN
    assert lay["o_end"] <= LN
    return lay


# ------------------------------ fused kernel ---------------------------------


def _pepper_fused_kernel(nan_ref, xp_ref, yp_ref, w_ref, o_ref, *, cout, enc):
    f32, bf16 = jnp.float32, jnp.bfloat16
    lane = lax.broadcasted_iota(jnp.int32, (1, LN), 1)
    has_nan = nan_ref[0] != 0                       # scalar-prefetch SMEM flag

    # Stage 1: 2x2/stride-2 patch-conv encode; e and the bias ("ones") lane pass
    # straight through via identity columns baked into the weights.
    s1 = jnp.dot(xp_ref[...], w_ref[0], preferred_element_type=f32)
    x_aug = jnp.where(lane < enc, jnp.maximum(s1, 0.0), s1).astype(bf16)

    # Stage 2: core1 'f' + core2 'f' + core1 'f' (again) as one fused GEMM.
    # tanh is applied only to the y/z head lanes; e / ones lanes pass through.
    z_lo, z_hi = 3 * cout + enc + 1, 3 * cout + 3 * enc + 1
    s2 = jnp.dot(x_aug, w_ref[1], preferred_element_type=f32)
    tanh_lanes = (lane < 3 * cout) | ((lane >= z_lo) & (lane < z_hi))
    core_f = jnp.where(tanh_lanes, jnp.tanh(s2), s2).astype(bf16)

    # Global-NaN gate: computed y (core_f) vs provided y.  Both slabs carry the
    # same [y1|y2|y3|e|1] lane layout, so this is one whole-panel select.
    bwd_lhs = jnp.where(has_nan, core_f, yp_ref[...])

    # Stage 3: core1/2/3 'b' fused as a block-diagonal GEMM (e + bias in K).
    s3 = jnp.dot(bwd_lhs, w_ref[2], preferred_element_type=f32)
    out3 = jnp.tanh(s3).astype(bf16)

    # Stage 4: conv_enc 'b' decode with the /3 head average folded into the
    # weights, plus pure-MXU assembly of the y1_/y2_/z_sum output lanes and the
    # decoder bias (from core_f's ones lane).  Lane-dense bf16 store.
    s4 = (jnp.dot(out3, w_ref[3], preferred_element_type=f32)
          + jnp.dot(core_f, w_ref[4], preferred_element_type=f32))
    o_ref[...] = s4.astype(o_ref.dtype)


# ------------------------------ params ---------------------------------------


def init_params(key, cin, cout, enc):
    """Build the packed bf16 weight slab [5, 128, 128] (and raw f32 weights)."""
    pf = 4 * cin
    L = _lane_layout(cin, cout, enc)
    ks = iter(jax.random.split(key, 24))

    def nrm(shape, s=0.1):
        return np.asarray(s * jax.random.normal(next(ks), shape, jnp.float32))

    raw = dict(
        we=nrm((pf, enc)), be=nrm((enc,)),
        wd=nrm((enc, pf)), bd=nrm((pf,)),
        wy=[nrm((enc, cout)) for _ in range(2)],
        by=[nrm((cout,)) for _ in range(2)],
        wz=[nrm((enc, enc)) for _ in range(2)],
        bz=[nrm((enc,)) for _ in range(2)],
        wey=[nrm((enc, cout)) for _ in range(2)],
        wb=[nrm((cout, enc)) for _ in range(3)],
        bb=[nrm((enc,)) for _ in range(3)],
        web=[nrm((enc, enc)) for _ in range(3)],
    )

    w = np.zeros((5, LN, LN), np.float32)
    I = np.eye

    # W0 : xp_aug -> stage-1  (patch conv; e + ones passthrough; be via ones).
    w[0, L["in_xp"]:L["in_xp"] + pf, L["s1_xenc"]:L["s1_xenc"] + enc] = raw["we"]
    w[0, L["in_e"]:L["in_e"] + enc, L["s1_e"]:L["s1_e"] + enc] = I(enc)
    w[0, L["in_one"], L["s1_xenc"]:L["s1_xenc"] + enc] = raw["be"]
    w[0, L["in_one"], L["s1_one"]] = 1.0

    # W1 : stage-1 -> core_f  (core1 'f', core2 'f', core1 'f' again; e/ones pass).
    xe, ee, oo = L["s1_xenc"], L["s1_e"], L["s1_one"]
    for col, i in ((L["f_y1"], 0), (L["f_y2"], 1), (L["f_y3"], 0)):
        w[1, xe:xe + enc, col:col + cout] = raw["wy"][i]
        w[1, ee:ee + enc, col:col + cout] = raw["wey"][i]
        w[1, oo, col:col + cout] = raw["by"][i]
    for col, i in ((L["f_z1"], 0), (L["f_z2"], 1)):
        w[1, xe:xe + enc, col:col + enc] = raw["wz"][i]
        w[1, oo, col:col + enc] = raw["bz"][i]
    w[1, ee:ee + enc, L["f_e"]:L["f_e"] + enc] = I(enc)
    w[1, oo, L["f_one"]] = 1.0

    # W2 : [y1|y2|y3|e|1] -> backward heads (block-diagonal cores 1/2/3 'b').
    for rows, i, col in ((L["f_y1"], 0, L["b_h1"]), (L["f_y2"], 1, L["b_h2"]),
                         (L["f_y3"], 2, L["b_h3"])):
        w[2, rows:rows + cout, col:col + enc] = raw["wb"][i]
    for i, col in enumerate((L["b_h1"], L["b_h2"], L["b_h3"])):
        w[2, L["f_e"]:L["f_e"] + enc, col:col + enc] = raw["web"][i]
        w[2, L["f_one"], col:col + enc] = raw["bb"][i]

    # W3 : backward heads -> x_patch  (conv_enc 'b', /3 average folded in).
    for col in (L["b_h1"], L["b_h2"], L["b_h3"]):
        w[3, col:col + enc, L["o_xp"]:L["o_xp"] + pf] = raw["wd"] / 3.0

    # W4 : core_f -> output passthroughs (y1_, y2_, z_sum = 2*z1_+z2_, bd).
    w[4, L["f_y1"]:L["f_y1"] + cout, L["o_y1"]:L["o_y1"] + cout] = I(cout)
    w[4, L["f_y2"]:L["f_y2"] + cout, L["o_y2"]:L["o_y2"] + cout] = I(cout)
    w[4, L["f_z1"]:L["f_z1"] + enc, L["o_z"]:L["o_z"] + enc] = 2.0 * I(enc)
    w[4, L["f_z2"]:L["f_z2"] + enc, L["o_z"]:L["o_z"] + enc] = I(enc)
    w[4, L["f_one"], L["o_xp"]:L["o_xp"] + pf] = raw["bd"]

    params = {"w": jnp.asarray(w, jnp.bfloat16)}
    return params, raw


# ------------------------------ forward wrapper -------------------------------


def pepper_net_multi_inv3_forward(params, x, y, e):
    """Mirrors PepperNetMultiInv3.forward(x, y, e).
    x: [N, Cin, H, W], y: [N, 3, Cout, H/2, W/2], e: [N, enc] -> (x_, y_, z_sum)."""
    N, cin, H, W = x.shape
    _, S, cout, Hh, Wh = y.shape
    enc = e.shape[-1]
    pf = 4 * cin
    T = Hh * Wh
    M = N * T
    lay = _lane_layout(cin, cout, enc)
    assert S == 3 and Hh == H // 2 and Wh == W // 2

    f32, bf16 = jnp.float32, jnp.bfloat16

    # --- layout plumbing only (pure permutations / pads, KiB-scale) ----------
    # Patchify x: each 2x2 patch becomes one token of pf = 4*cin features.
    xp = (x.astype(f32).reshape(N, cin, Hh, 2, Wh, 2)
          .transpose(0, 2, 4, 3, 5, 1).reshape(M, pf))
    e_rows = jnp.broadcast_to(e.astype(f32)[:, None, :], (N, T, enc)).reshape(M, enc)
    ones = jnp.ones((M, 1), f32)

    xp_aug = jnp.concatenate(
        [xp, e_rows, ones, jnp.zeros((M, LN - pf - enc - 1), f32)], axis=1
    ).astype(bf16)

    # Provided y tokens, laid out to match core_f's [y1|y2|y3|e|1] lanes so the
    # NaN gate is a single whole-panel select in the kernel.
    yt = y.astype(f32).transpose(0, 3, 4, 1, 2).reshape(M, S * cout)
    y_prov = jnp.concatenate(
        [yt, e_rows, ones, jnp.zeros((M, LN - S * cout - enc - 1), f32)], axis=1
    ).astype(bf16)

    # Global NaN flag over the *whole* provided y, computed once (scalar prefetch).
    nan_flag = jnp.any(jnp.isnan(y)).astype(jnp.int32).reshape(1)

    # --- batch folded into the GEMM M dimension; MXU-friendly M tile ----------
    if M % 256 == 0:
        TM = 256      # one full v6e/v7x MXU pass (two on v5e) per push
    elif M % 128 == 0:
        TM = 128      # one full v5e MXU pass
    else:
        TM = M        # tiny fallback: single full-extent block

    kernel = functools.partial(_pepper_fused_kernel, cout=cout, enc=enc)
    slab = pl.pallas_call(
        kernel,
        out_shape=jax.ShapeDtypeStruct((M, LN), bf16),
        grid_spec=pltpu.PrefetchScalarGridSpec(
            num_scalar_prefetch=1,
            grid=(M // TM,),
            in_specs=[
                pl.BlockSpec((TM, LN), lambda i, nf: (i, 0)),        # xp_aug
                pl.BlockSpec((TM, LN), lambda i, nf: (i, 0)),        # y_prov
                pl.BlockSpec((5, LN, LN), lambda i, nf: (0, 0, 0)),  # weight slab
            ],
            out_specs=pl.BlockSpec((TM, LN), lambda i, nf: (i, 0)),
        ),
        compiler_params=pltpu.CompilerParams(
            dimension_semantics=("parallel",)),                      # megacore split
    )(nan_flag, xp_aug, y_prov, params["w"])

    # --- unpack the packed slab back to the module's NCHW output forms --------
    slab = slab.astype(f32)
    x_patch = slab[:, lay["o_xp"]:lay["o_xp"] + pf]
    x_ = (x_patch.reshape(N, Hh, Wh, 2, 2, cin)
          .transpose(0, 5, 1, 3, 2, 4).reshape(N, cin, H, W))

    def tok2img(s0, c):
        return slab[:, s0:s0 + c].reshape(N, Hh, Wh, c).transpose(0, 3, 1, 2)

    y1 = tok2img(lay["o_y1"], cout)
    y2 = tok2img(lay["o_y2"], cout)
    y_ = jnp.stack([y1, y2, y1], axis=1)       # third head is core1 again
    z_ = tok2img(lay["o_z"], enc)
    return x_, y_, z_


# ------------------------------ pure-JAX reference ----------------------------


def reference_forward(raw, x, y, e):
    """f32 reference of the same synthesized math, for correctness checking."""
    N, cin, H, W = x.shape
    _, S, cout, Hh, Wh = y.shape
    pf, T = 4 * cin, Hh * Wh
    xp = (x.reshape(N, cin, Hh, 2, Wh, 2)
          .transpose(0, 2, 4, 3, 5, 1).reshape(N, T, pf))
    x_enc = jnp.maximum(xp @ raw["we"] + raw["be"], 0.0)

    def core_f(i):
        y_ = jnp.tanh(x_enc @ raw["wy"][i] + raw["by"][i]
                      + (e @ raw["wey"][i])[:, None, :])
        z_ = jnp.tanh(x_enc @ raw["wz"][i] + raw["bz"][i])
        return y_, z_

    y1_, z1_ = core_f(0)
    y2_, z2_ = core_f(1)
    y3_, z3_ = core_f(0)                       # reference calls core1 again
    has_nan = jnp.any(jnp.isnan(y))
    yt = y.transpose(0, 3, 4, 1, 2).reshape(N, T, S, cout)
    y1 = jnp.where(has_nan, y1_, yt[:, :, 0])
    y2 = jnp.where(has_nan, y2_, yt[:, :, 1])
    y3 = jnp.where(has_nan, y3_, yt[:, :, 2])

    def core_b(i, yi):
        return jnp.tanh(yi @ raw["wb"][i] + raw["bb"][i]
                        + (e @ raw["web"][i])[:, None, :])

    y_enc = (core_b(0, y1) + core_b(1, y2) + core_b(2, y3)) / 3.0
    x_patch = y_enc @ raw["wd"] + raw["bd"]
    x_ = (x_patch.reshape(N, Hh, Wh, 2, 2, cin)
          .transpose(0, 5, 1, 3, 2, 4).reshape(N, cin, H, W))

    def tok2img(t, c):
        return t.reshape(N, Hh, Wh, c).transpose(0, 3, 1, 2)

    y_ = jnp.stack([tok2img(y1_, cout), tok2img(y2_, cout), tok2img(y3_, cout)],
                   axis=1)
    z_ = tok2img(z1_ + z2_ + z3_, enc)
    return x_, y_, z_


# ------------------------------- driver ---------------------------------------

if __name__ == "__main__":
    batch, cin, cout, spatial, enc = 4, 4, 4, 16, 32   # M = 4*64 = 256 tokens

    key = jax.random.PRNGKey(0)
    kx, ky, ke, kp = jax.random.split(key, 4)
    x = jax.random.normal(kx, (batch, cin, spatial, spatial), jnp.float32)
    y = jax.random.normal(ky, (batch, 3, cout, spatial // 2, spatial // 2),
                          jnp.float32)
    e = jax.random.normal(ke, (batch, enc), jnp.float32)
    params, raw = init_params(kp, cin, cout, enc)

    fwd = jax.jit(pepper_net_multi_inv3_forward)

    # Non-NaN branch: backward path consumes the *provided* y.
    x_, y_, z_ = fwd(params, x, y, e)
    jax.block_until_ready((x_, y_, z_))
    assert x_.shape == (batch, cin, spatial, spatial)
    assert y_.shape == (batch, 3, cout, spatial // 2, spatial // 2)
    assert z_.shape == (batch, enc, spatial // 2, spatial // 2)
    xr, yr, zr = reference_forward(raw, x, y, e)
    np.testing.assert_allclose(np.asarray(x_), np.asarray(xr), atol=5e-2, rtol=2e-2)
    np.testing.assert_allclose(np.asarray(y_), np.asarray(yr), atol=5e-2, rtol=2e-2)
    np.testing.assert_allclose(np.asarray(z_), np.asarray(zr), atol=5e-2, rtol=2e-2)

    # NaN branch: any NaN anywhere in y -> backward path uses the computed y_.
    y_nan = y.at[0, 0, 0, 0, 0].set(jnp.nan)
    x2_, y2_, z2_ = fwd(params, x, y_nan, e)
    jax.block_until_ready((x2_, y2_, z2_))
    xr2, yr2, zr2 = reference_forward(raw, x, y_nan, e)
    np.testing.assert_allclose(np.asarray(x2_), np.asarray(xr2), atol=5e-2, rtol=2e-2)
    np.testing.assert_allclose(np.asarray(y2_), np.asarray(yr2), atol=5e-2, rtol=2e-2)
    np.testing.assert_allclose(np.asarray(z2_), np.asarray(zr2), atol=5e-2, rtol=2e-2)
    assert bool(jnp.all(jnp.isfinite(x2_)))
    assert bool(jnp.all(jnp.isfinite(y2_)))
    assert bool(jnp.all(jnp.isfinite(z2_)))

    print("KERNEL_OK")
</pallas_src>

<mosaic_0001>
module attributes {stable_mosaic.version = 11 : i64} {
  func.func @_pepper_fused_kernel(%arg0: i32, %arg1: memref<1xi32, #tpu.memory_space<smem>>, %arg2: memref<256x128xbf16, #tpu.memory_space<vmem>>, %arg3: memref<256x128xbf16, #tpu.memory_space<vmem>>, %arg4: memref<5x128x128xbf16, #tpu.memory_space<vmem>>, %arg5: memref<256x128xbf16, #tpu.memory_space<vmem>>) attributes {dimension_semantics = [#tpu.dimension_semantics<parallel>], iteration_bounds = array<i64: 1>, scalar_prefetch = 1 : i64, scratch_operands = 0 : i64, tpu.core_type = #tpu.core_type<tc>, window_params = [{transform_indices = @transform_0, window_bounds = array<i64: 256, 128>}, {transform_indices = @transform_1, window_bounds = array<i64: 256, 128>}, {pipeline_mode = #tpu.pipeline_mode<synchronous>, transform_indices = @transform_2, window_bounds = array<i64: 5, 128, 128>}, {transform_indices = @transform_3, window_bounds = array<i64: 256, 128>}]} {
    %0 = tpu.iota {dimensions = array<i32: 1>} : vector<1x128xi32>
    %c0 = arith.constant 0 : index
    %1 = memref.load %arg1[%c0] : memref<1xi32, #tpu.memory_space<smem>>
    %c0_i32 = arith.constant 0 : i32
    %2 = arith.cmpi ne, %1, %c0_i32 : i32
    %c0_0 = arith.constant 0 : index
    %c0_1 = arith.constant 0 : index
    %3 = vector.load %arg2[%c0_0, %c0_1] : memref<256x128xbf16, #tpu.memory_space<vmem>>, vector<256x128xbf16>
    %c0_2 = arith.constant 0 : index
    %c0_3 = arith.constant 0 : index
    %c0_4 = arith.constant 0 : index
    %4 = vector.load %arg4[%c0_2, %c0_3, %c0_4] : memref<5x128x128xbf16, #tpu.memory_space<vmem>>, vector<1x128x128xbf16>
    %5 = vector.shape_cast %4 : vector<1x128x128xbf16> to vector<128x128xbf16>
    %cst = arith.constant dense<0.000000e+00> : vector<256x128xf32>
    %6 = tpu.matmul %3, %5, %cst {dimension_numbers = #tpu.dot_dimension_numbers<[1], [0], [0], [1], [0, 0, 1, 1], [], []>} : vector<256x128xbf16>, vector<128x128xbf16>, vector<256x128xf32> -> vector<256x128xf32>
    %c32_i32 = arith.constant 32 : i32
    %7 = vector.broadcast %c32_i32 : i32 to vector<1x128xi32>
    %8 = arith.cmpi slt, %0, %7 : vector<1x128xi32>
    %cst_5 = arith.constant 0.000000e+00 : f32
    %9 = vector.broadcast %cst_5 : f32 to vector<256x128xf32>
    %10 = arith.maximumf %6, %9 : vector<256x128xf32>
    %11 = vector.shape_cast %8 : vector<1x128xi1> to vector<1x128xi1>
    %12 = vector.broadcast %11 : vector<1x128xi1> to vector<256x128xi1>
    %13 = arith.select %12, %10, %6 : vector<256x128xi1>, vector<256x128xf32>
    %14 = arith.truncf %13 : vector<256x128xf32> to vector<256x128xbf16>
    %c1 = arith.constant 1 : index
    %c0_6 = arith.constant 0 : index
    %c0_7 = arith.constant 0 : index
    %15 = vector.load %arg4[%c1, %c0_6, %c0_7] : memref<5x128x128xbf16, #tpu.memory_space<vmem>>, vector<1x128x128xbf16>
    %16 = vector.shape_cast %15 : vector<1x128x128xbf16> to vector<128x128xbf16>
    %cst_8 = arith.constant dense<0.000000e+00> : vector<256x128xf32>
    %17 = tpu.matmul %14, %16, %cst_8 {dimension_numbers = #tpu.dot_dimension_numbers<[1], [0], [0], [1], [0, 0, 1, 1], [], []>} : vector<256x128xbf16>, vector<128x128xbf16>, vector<256x128xf32> -> vector<256x128xf32>
    %c12_i32 = arith.constant 12 : i32
    %18 = vector.broadcast %c12_i32 : i32 to vector<1x128xi32>
    %19 = arith.cmpi slt, %0, %18 : vector<1x128xi32>
    %c45_i32 = arith.constant 45 : i32
    %20 = vector.broadcast %c45_i32 : i32 to vector<1x128xi32>
    %21 = arith.cmpi sge, %0, %20 : vector<1x128xi32>
    %c109_i32 = arith.constant 109 : i32
    %22 = vector.broadcast %c109_i32 : i32 to vector<1x128xi32>
    %23 = arith.cmpi slt, %0, %22 : vector<1x128xi32>
    %24 = arith.andi %21, %23 : vector<1x128xi1>
    %25 = arith.ori %19, %24 : vector<1x128xi1>
    %26 = math.tanh %17 : vector<256x128xf32>
    %27 = vector.shape_cast %25 : vector<1x128xi1> to vector<1x128xi1>
    %28 = vector.broadcast %27 : vector<1x128xi1> to vector<256x128xi1>
    %29 = arith.select %28, %26, %17 : vector<256x128xi1>, vector<256x128xf32>
    %30 = arith.truncf %29 : vector<256x128xf32> to vector<256x128xbf16>
    %c0_9 = arith.constant 0 : index
    %c0_10 = arith.constant 0 : index
    %31 = vector.load %arg3[%c0_9, %c0_10] : memref<256x128xbf16, #tpu.memory_space<vmem>>, vector<256x128xbf16>
    %32 = arith.select %2, %30, %31 : vector<256x128xbf16>
    %c2 = arith.constant 2 : index
    %c0_11 = arith.constant 0 : index
    %c0_12 = arith.constant 0 : index
    %33 = vector.load %arg4[%c2, %c0_11, %c0_12] : memref<5x128x128xbf16, #tpu.memory_space<vmem>>, vector<1x128x128xbf16>
    %34 = vector.shape_cast %33 : vector<1x128x128xbf16> to vector<128x128xbf16>
    %cst_13 = arith.constant dense<0.000000e+00> : vector<256x128xf32>
    %35 = tpu.matmul %32, %34, %cst_13 {dimension_numbers = #tpu.dot_dimension_numbers<[1], [0], [0], [1], [0, 0, 1, 1], [], []>} : vector<256x128xbf16>, vector<128x128xbf16>, vector<256x128xf32> -> vector<256x128xf32>
    %36 = math.tanh %35 : vector<256x128xf32>
    %37 = arith.truncf %36 : vector<256x128xf32> to vector<256x128xbf16>
    %c3 = arith.constant 3 : index
    %c0_14 = arith.constant 0 : index
    %c0_15 = arith.constant 0 : index
    %38 = vector.load %arg4[%c3, %c0_14, %c0_15] : memref<5x128x128xbf16, #tpu.memory_space<vmem>>, vector<1x128x128xbf16>
    %39 = vector.shape_cast %38 : vector<1x128x128xbf16> to vector<128x128xbf16>
    %cst_16 = arith.constant dense<0.000000e+00> : vector<256x128xf32>
    %40 = tpu.matmul %37, %39, %cst_16 {dimension_numbers = #tpu.dot_dimension_numbers<[1], [0], [0], [1], [0, 0, 1, 1], [], []>} : vector<256x128xbf16>, vector<128x128xbf16>, vector<256x128xf32> -> vector<256x128xf32>
    %c4 = arith.constant 4 : index
    %c0_17 = arith.constant 0 : index
    %c0_18 = arith.constant 0 : index
    %41 = vector.load %arg4[%c4, %c0_17, %c0_18] : memref<5x128x128xbf16, #tpu.memory_space<vmem>>, vector<1x128x128xbf16>
    %42 = vector.shape_cast %41 : vector<1x128x128xbf16> to vector<128x128xbf16>
    %cst_19 = arith.constant dense<0.000000e+00> : vector<256x128xf32>
    %43 = tpu.matmul %30, %42, %cst_19 {dimension_numbers = #tpu.dot_dimension_numbers<[1], [0], [0], [1], [0, 0, 1, 1], [], []>} : vector<256x128xbf16>, vector<128x128xbf16>, vector<256x128xf32> -> vector<256x128xf32>
    %44 = arith.addf %40, %43 : vector<256x128xf32>
    %45 = arith.truncf %44 : vector<256x128xf32> to vector<256x128xbf16>
    %c0_20 = arith.constant 0 : index
    %c0_21 = arith.constant 0 : index
    %46 = vector.load %arg5[%c0_20, %c0_21] : memref<256x128xbf16, #tpu.memory_space<vmem>>, vector<256x128xbf16>
    tpu.vector_store %arg5[%c0_20, %c0_21], %45 {strides = array<i32>} : memref<256x128xbf16, #tpu.memory_space<vmem>>, vector<256x128xbf16>,
    return
  }
  func.func @transform_0(%arg0: i32, %arg1: memref<1xi32, #tpu.memory_space<smem>>) -> (i32, i32) {
    %c0_i32 = arith.constant 0 : i32
    %c0_i32_0 = arith.constant 0 : i32
    return %arg0, %c0_i32 : i32, i32
  }
  func.func @transform_1(%arg0: i32, %arg1: memref<1xi32, #tpu.memory_space<smem>>) -> (i32, i32) {
    %c0_i32 = arith.constant 0 : i32
    %c0_i32_0 = arith.constant 0 : i32
    return %arg0, %c0_i32 : i32, i32
  }
  func.func @transform_2(%arg0: i32, %arg1: memref<1xi32, #tpu.memory_space<smem>>) -> (i32, i32, i32) {
    %c0_i32 = arith.constant 0 : i32
    %c0_i32_0 = arith.constant 0 : i32
    %c0_i32_1 = arith.constant 0 : i32
    %c0_i32_2 = arith.constant 0 : i32
    return %c0_i32, %c0_i32_0, %c0_i32_1 : i32, i32, i32
  }
  func.func @transform_3(%arg0: i32, %arg1: memref<1xi32, #tpu.memory_space<smem>>) -> (i32, i32) {
    %c0_i32 = arith.constant 0 : i32
    %c0_i32_0 = arith.constant 0 : i32
    return %arg0, %c0_i32 : i32, i32
  }
}

</mosaic_0001>

<llo_original>
// kernel: pepper_net_multi_inv3_forward.1
$region0: #{pepper_net_multi_inv3_forward.1}
  #allocation0 [shape = 'u32[]', space=smem, size = 0x4, offset = 0x4, fixed_abs, tag = 'smem constant byte address 0x4 - core index']
  #allocation1 [shape = 'u32[144,128]{1,0:T(1,128)}', space=vmem, size = 0x12000, scoped, tag = 'internal scratch']
  #allocation2 [shape = 's32[1]{0}', space=sflag, size = 0x4, scoped, tag = 'scoped memory for pepper_net_multi_inv3_forward.1']
  #allocation3 [shape = 's32[1]{0:T(128)S(6)}', space=smem, size = 0x200, scoped, tag = 'prefetched SMEM operand 0']
  %s0 = inlined_call_operand.<no memory space> [shape: s32[1], index: 0, kind: input, shape index: {}]
  %s1 = inlined_call_operand.vmem [shape: bf16[256,128], index: 1, kind: input, shape index: {}]
  %s2 = inlined_call_operand.vmem [shape: bf16[256,128], index: 2, kind: input, shape index: {}]
  %s3 = inlined_call_operand.vmem [shape: bf16[5,128,128], index: 3, kind: input, shape index: {}]
  %s4 = inlined_call_operand.vmem [shape: bf16[256,128], index: 4, kind: output, shape index: {}]
  %s5 = sld [smem:[#allocation0]]
  $region22: #{pepper_net_multi_inv3_forward.1} parent=0
    _
  %s7 = ssub.s32 1, %s5
  %s8 = scalar_select 0, %s7, %s5
  %9 = sst [smem:[#allocation3]] %s0
  // Predicated region
  $region2: #{pepper_net_multi_inv3_forward.1} parent=0 // pred_check
    _
  $region3: #{pepper_net_multi_inv3_forward.1} parent=0 // pred_check_branch
    %11 = sbr.rel (0) target = $region5
  $region4: #{pepper_net_multi_inv3_forward.1} parent=0 // pred_region
    _
  $region5: #{pepper_net_multi_inv3_forward.1} parent=0 // pred_fallthru
    _
  // Predicated region
  $region6: #{pepper_net_multi_inv3_forward.1} parent=0 // pred_check
    _
  $region7: #{pepper_net_multi_inv3_forward.1} parent=0 // pred_check_branch
    %13 = sbr.rel (0) target = $region9
  $region8: #{pepper_net_multi_inv3_forward.1} parent=0 // pred_region
    _
  $region9: #{pepper_net_multi_inv3_forward.1} parent=0 // pred_fallthru
    _
  // Predicated region
  $region10: #{pepper_net_multi_inv3_forward.1} parent=0 // pred_check
    _
  $region11: #{pepper_net_multi_inv3_forward.1} parent=0 // pred_check_branch
    %15 = sbr.rel (0) target = $region13
  $region12: #{pepper_net_multi_inv3_forward.1} parent=0 // pred_region
    _
  $region13: #{pepper_net_multi_inv3_forward.1} parent=0 // pred_fallthru
    _
  %v17 = vlaneseq
  %v18 = vand.u32 %v17, 127
  %s19 = sld [smem:[#allocation3]]
  %p20 = scmp.ne.s32.totalorder %s19, 0
  %v21 = vld [vmem:[%s1] sm:$0xf]
  %v22 = vld [vmem:[%s1 + $0x4] sm:$0xf]
  %v23 = vld [vmem:[%s1 + $0x8] sm:$0xf]
  %v24 = vld [vmem:[%s1 + $0xc] sm:$0xf]
  %v25 = vld [vmem:[%s1 + $0x10] sm:$0xf]
  %v26 = vld [vmem:[%s1 + $0x14] sm:$0xf]
  %v27 = vld [vmem:[%s1 + $0x18] sm:$0xf]
  %v28 = vld [vmem:[%s1 + $0x1c] sm:$0xf]
  %v29 = vld [vmem:[%s1 + $0x20] sm:$0xf]
  %v30 = vld [vmem:[%s1 + $0x24] sm:$0xf]
  %v31 = vld [vmem:[%s1 + $0x28] sm:$0xf]
  %v32 = vld [vmem:[%s1 + $0x2c] sm:$0xf]
  %v33 = vld [vmem:[%s1 + $0x30] sm:$0xf]
  %v34 = vld [vmem:[%s1 + $0x34] sm:$0xf]
  %v35 = vld [vmem:[%s1 + $0x38] sm:$0xf]
  %v36 = vld [vmem:[%s1 + $0x3c] sm:$0xf]
  %v37 = vld [vmem:[%s1 + $0x40] sm:$0xf]
  %v38 = vld [vmem:[%s1 + $0x44] sm:$0xf]
  %v39 = vld [vmem:[%s1 + $0x48] sm:$0xf]
  %v40 = vld [vmem:[%s1 + $0x4c] sm:$0xf]
  %v41 = vld [vmem:[%s1 + $0x50] sm:$0xf]
  %v42 = vld [vmem:[%s1 + $0x54] sm:$0xf]
  %v43 = vld [vmem:[%s1 + $0x58] sm:$0xf]
  %v44 = vld [vmem:[%s1 + $0x5c] sm:$0xf]
  %v45 = vld [vmem:[%s1 + $0x60] sm:$0xf]
  %v46 = vld [vmem:[%s1 + $0x64] sm:$0xf]
  %v47 = vld [vmem:[%s1 + $0x68] sm:$0xf]
  %v48 = vld [vmem:[%s1 + $0x6c] sm:$0xf]
  %v49 = vld [vmem:[%s1 + $0x70] sm:$0xf]
  %v50 = vld [vmem:[%s1 + $0x74] sm:$0xf]
  %v51 = vld [vmem:[%s1 + $0x78] sm:$0xf]
  %v52 = vld [vmem:[%s1 + $0x7c] sm:$0xf]
  %v53 = vld [vmem:[%s3] sm:$0xf]
  %v54 = vld [vmem:[%s3 + $0x4] sm:$0xf]
  %v55 = vld [vmem:[%s3 + $0x8] sm:$0xf]
  %v56 = vld [vmem:[%s3 + $0xc] sm:$0xf]
  %v57 = vld [vmem:[%s3 + $0x10] sm:$0xf]
  %v58 = vld [vmem:[%s3 + $0x14] sm:$0xf]
  %v59 = vld [vmem:[%s3 + $0x18] sm:$0xf]
  %v60 = vld [vmem:[%s3 + $0x1c] sm:$0xf]
  %v61 = vld [vmem:[%s3 + $0x20] sm:$0xf]
  %v62 = vld [vmem:[%s3 + $0x24] sm:$0xf]
  %v63 = vld [vmem:[%s3 + $0x28] sm:$0xf]
  %v64 = vld [vmem:[%s3 + $0x2c] sm:$0xf]
  %v65 = vld [vmem:[%s3 + $0x30] sm:$0xf]
  %v66 = vld [vmem:[%s3 + $0x34] sm:$0xf]
  %v67 = vld [vmem:[%s3 + $0x38] sm:$0xf]
  %v68 = vld [vmem:[%s3 + $0x3c] sm:$0xf]
  %v101 = vunpack.c.l.b16 %v21
  %v102 = vunpack.c.l.b16 %v22
  %v103 = vunpack.c.l.b16 %v23
  %v104 = vunpack.c.l.b16 %v24
  %v105 = vunpack.c.l.b16 %v25
  %v106 = vunpack.c.l.b16 %v26
  %v107 = vunpack.c.l.b16 %v27
  %v108 = vunpack.c.l.b16 %v28
  %v109 = vunpack.c.l.b16 %v29
  %v110 = vunpack.c.l.b16 %v30
  %v111 = vunpack.c.l.b16 %v31
  %v112 = vunpack.c.l.b16 %v32
  %v113 = vunpack.c.l.b16 %v33
  %v114 = vunpack.c.l.b16 %v34
  %v115 = vunpack.c.l.b16 %v35
  %v116 = vunpack.c.l.b16 %v36
  %v117 = vunpack.c.l.b16 %v37
  %v118 = vunpack.c.l.b16 %v38
  %v119 = vunpack.c.l.b16 %v39
  %v120 = vunpack.c.l.b16 %v40
  %v121 = vunpack.c.l.b16 %v41
  %v122 = vunpack.c.l.b16 %v42
  %v123 = vunpack.c.l.b16 %v43
  %v124 = vunpack.c.l.b16 %v44
  %v125 = vunpack.c.l.b16 %v45
  %v126 = vunpack.c.l.b16 %v46
  %v127 = vunpack.c.l.b16 %v47
  %v128 = vunpack.c.l.b16 %v48
  %v129 = vunpack.c.l.b16 %v49
  %v130 = vunpack.c.l.b16 %v50
  %v131 = vunpack.c.l.b16 %v51
  %v132 = vunpack.c.l.b16 %v52
  %v133 = vpack.c.b16 %v102, %v101
  %v134 = vpack.c.b16 %v104, %v103
  %v135 = vpack.c.b16 %v106, %v105
  %v136 = vpack.c.b16 %v108, %v107
  %v137 = vpack.c.b16 %v110, %v109
  %v138 = vpack.c.b16 %v112, %v111
  %v139 = vpack.c.b16 %v114, %v113
  %v140 = vpack.c.b16 %v116, %v115
  %v141 = vpack.c.b16 %v118, %v117
  %v142 = vpack.c.b16 %v120, %v119
  %v143 = vpack.c.b16 %v122, %v121
  %v144 = vpack.c.b16 %v124, %v123
  %v145 = vpack.c.b16 %v126, %v125
  %v146 = vpack.c.b16 %v128, %v127
  %v147 = vpack.c.b16 %v130, %v129
  %v148 = vpack.c.b16 %v132, %v131
  %v181 = vunpack.c.l.b16 %v53
  %v182 = vunpack.c.l.b16 %v54
  %v183 = vunpack.c.l.b16 %v55
  %v184 = vunpack.c.l.b16 %v56
  %v185 = vunpack.c.l.b16 %v57
  %v186 = vunpack.c.l.b16 %v58
  %v187 = vunpack.c.l.b16 %v59
  %v188 = vunpack.c.l.b16 %v60
  %v189 = vunpack.c.l.b16 %v61
  %v190 = vunpack.c.l.b16 %v62
  %v191 = vunpack.c.l.b16 %v63
  %v192 = vunpack.c.l.b16 %v64
  %v193 = vunpack.c.l.b16 %v65
  %v194 = vunpack.c.l.b16 %v66
  %v195 = vunpack.c.l.b16 %v67
  %v196 = vunpack.c.l.b16 %v68
  %v197 = vpack.c.b16 %v182, %v181
  %v198 = vpack.c.b16 %v184, %v183
  %v199 = vpack.c.b16 %v186, %v185
  %v200 = vpack.c.b16 %v188, %v187
  %v201 = vpack.c.b16 %v190, %v189
  %v202 = vpack.c.b16 %v192, %v191
  %v203 = vpack.c.b16 %v194, %v193
  %v204 = vpack.c.b16 %v196, %v195
  %213 = vmatprep.subr.bf16.mxu0 0
  %214 = vmatpush1.bf16.msra.mxu0 %v197
  %215 = vmatprep.subr.bf16.mxu0 0
  %216 = vmatpush1.bf16.msra.mxu0 %v198
  %217 = vmatprep.subr.bf16.mxu0 0
  %218 = vmatpush1.bf16.msra.mxu0 %v199
  %219 = vmatprep.subr.bf16.mxu0 0
  %220 = vmatpush1.bf16.msra.mxu0 %v200
  %221 = vmatprep.subr.bf16.mxu0 0
  %222 = vmatpush1.bf16.msra.mxu0 %v201
  %223 = vmatprep.subr.bf16.mxu0 0
  %224 = vmatpush1.bf16.msra.mxu0 %v202
  %225 = vmatprep.subr.bf16.mxu0 0
  %226 = vmatpush1.bf16.msra.mxu0 %v203
  %227 = vmatprep.subr.bf16.mxu0 0
  %228 = vmatpush1.bf16.msra.mxu0 %v204
  %229 = vmatprep.subr.bf16.mxu0 0
  %230 = vmatpush1.bf16.msra.mxu0 0
  %231 = vmatprep.subr.bf16.mxu0 0
  %232 = vmatpush1.bf16.msra.mxu0 0
  %233 = vmatprep.subr.bf16.mxu0 0
  %234 = vmatpush1.bf16.msra.mxu0 0
  %235 = vmatprep.subr.bf16.mxu0 0
  %236 = vmatpush1.bf16.msra.mxu0 0
  %237 = vmatprep.subr.bf16.mxu0 0
  %238 = vmatpush1.bf16.msra.mxu0 0
  %239 = vmatprep.subr.bf16.mxu0 0
  %240 = vmatpush1.bf16.msra.mxu0 0
  %241 = vmatprep.subr.bf16.mxu0 0
  %242 = vmatpush1.bf16.msra.mxu0 0
  %243 = vmatprep.subr.bf16.mxu0 0
  %244 = vmatpush1.bf16.msra.mxu0 0
  %245 = vmatprep.mubr.bf16.mxu0 0
  %246 = vmatmul.mubr.bf16.gmra.mrb[0].mxu0 %v133
  %v247 = vpop.f32.mrb[0].mxu0
  %v248 = vadd.f32 0.0, %v247
  %v249 = vpop.f32.mrb[0].mxu0
  %v250 = vpop.f32.mrb[0].mxu0
  %v251 = vadd.f32 0.0, %v250
  %v252 = vpop.f32.mrb[0].mxu0
  %253 = vmatprep.mubr.bf16.mxu0 0
  %254 = vmatmul.mubr.bf16.gmra.mrb[0].mxu0 %v134
  %v255 = vpop.f32.mrb[0].mxu0
  %v256 = vadd.f32 0.0, %v255
  %v257 = vpop.f32.mrb[0].mxu0
  %v258 = vpop.f32.mrb[0].mxu0
  %v259 = vadd.f32 0.0, %v258
  %v260 = vpop.f32.mrb[0].mxu0
  %261 = vmatprep.mubr.bf16.mxu0 0
  %262 = vmatmul.mubr.bf16.gmra.mrb[0].mxu0 %v135
  %v263 = vpop.f32.mrb[0].mxu0
  %v264 = vadd.f32 0.0, %v263
  %v265 = vpop.f32.mrb[0].mxu0
  %v266 = vpop.f32.mrb[0].mxu0
  %v267 = vadd.f32 0.0, %v266
  %v268 = vpop.f32.mrb[0].mxu0
  %269 = vmatprep.mubr.bf16.mxu0 0
  %270 = vmatmul.mubr.bf16.gmra.mrb[0].mxu0 %v136
  %v271 = vpop.f32.mrb[0].mxu0
  %v272 = vadd.f32 0.0, %v271
  %v273 = vpop.f32.mrb[0].mxu0
  %v274 = vpop.f32.mrb[0].mxu0
  %v275 = vadd.f32 0.0, %v274
  %v276 = vpop.f32.mrb[0].mxu0
  %277 = vmatprep.mubr.bf16.mxu0 0
  %278 = vmatmul.mubr.bf16.gmra.mrb[0].mxu0 %v137
  %v279 = vpop.f32.mrb[0].mxu0
  %v280 = vadd.f32 0.0, %v279
  %v281 = vpop.f32.mrb[0].mxu0
  %v282 = vpop.f32.mrb[0].mxu0
  %v283 = vadd.f32 0.0, %v282
  %v284 = vpop.f32.mrb[0].mxu0
  %285 = vmatprep.mubr.bf16.mxu0 0
  %286 = vmatmul.mubr.bf16.gmra.mrb[0].mxu0 %v138
  %v287 = vpop.f32.mrb[0].mxu0
  %v288 = vadd.f32 0.0, %v287
  %v289 = vpop.f32.mrb[0].mxu0
  %v290 = vpop.f32.mrb[0].mxu0
  %v291 = vadd.f32 0.0, %v290
  %v292 = vpop.f32.mrb[0].mxu0
  %293 = vmatprep.mubr.bf16.mxu0 0
  %294 = vmatmul.mubr.bf16.gmra.mrb[0].mxu0 %v139
  %v295 = vpop.f32.mrb[0].mxu0
  %v296 = vadd.f32 0.0, %v295
  %v297 = vpop.f32.mrb[0].mxu0
  %v298 = vpop.f32.mrb[0].mxu0
  %v299 = vadd.f32 0.0, %v298
  %v300 = vpop.f32.mrb[0].mxu0
  %301 = vmatprep.mubr.bf16.mxu0 0
  %302 = vmatmul.mubr.bf16.gmra.mrb[0].mxu0 %v140
  %v303 = vpop.f32.mrb[0].mxu0
  %v304 = vadd.f32 0.0, %v303
  %v305 = vpop.f32.mrb[0].mxu0
  %v306 = vpop.f32.mrb[0].mxu0
  %v307 = vadd.f32 0.0, %v306
  %v308 = vpop.f32.mrb[0].mxu0
  %309 = vmatprep.mubr.bf16.mxu0 0
  %310 = vmatmul.mubr.bf16.gmra.mrb[0].mxu0 %v141
  %v311 = vpop.f32.mrb[0].mxu0
  %v312 = vadd.f32 0.0, %v311
  %v313 = vpop.f32.mrb[0].mxu0
  %v314 = vpop.f32.mrb[0].mxu0
  %v315 = vadd.f32 0.0, %v314
  %v316 = vpop.f32.mrb[0].mxu0
  %317 = vmatprep.mubr.bf16.mxu0 0
  %318 = vmatmul.mubr.bf16.gmra.mrb[0].mxu0 %v142
  %v319 = vpop.f32.mrb[0].mxu0
  %v320 = vadd.f32 0.0, %v319
  %v321 = vpop.f32.mrb[0].mxu0
  %v322 = vpop.f32.mrb[0].mxu0
  %v323 = vadd.f32 0.0, %v322
  %v324 = vpop.f32.mrb[0].mxu0
  %325 = vmatprep.mubr.bf16.mxu0 0
  %326 = vmatmul.mubr.bf16.gmra.mrb[0].mxu0 %v143
  %v327 = vpop.f32.mrb[0].mxu0
  %v328 = vadd.f32 0.0, %v327
  %v329 = vpop.f32.mrb[0].mxu0
  %v330 = vpop.f32.mrb[0].mxu0
  %v331 = vadd.f32 0.0, %v330
  %v332 = vpop.f32.mrb[0].mxu0
  %333 = vmatprep.mubr.bf16.mxu0 0
  %334 = vmatmul.mubr.bf16.gmra.mrb[0].mxu0 %v144
  %v335 = vpop.f32.mrb[0].mxu0
  %v336 = vadd.f32 0.0, %v335
  %v337 = vpop.f32.mrb[0].mxu0
  %v338 = vpop.f32.mrb[0].mxu0
  %v339 = vadd.f32 0.0, %v338
  %v340 = vpop.f32.mrb[0].mxu0
  %341 = vmatprep.mubr.bf16.mxu0 0
  %342 = vmatmul.mubr.bf16.gmra.mrb[0].mxu0 %v145
  %v343 = vpop.f32.mrb[0].mxu0
  %v344 = vadd.f32 0.0, %v343
  %v345 = vpop.f32.mrb[0].mxu0
  %v346 = vpop.f32.mrb[0].mxu0
  %v347 = vadd.f32 0.0, %v346
  %v348 = vpop.f32.mrb[0].mxu0
  %349 = vmatprep.mubr.bf16.mxu0 0
  %350 = vmatmul.mubr.bf16.gmra.mrb[0].mxu0 %v146
  %v351 = vpop.f32.mrb[0].mxu0
  %v352 = vadd.f32 0.0, %v351
  %v353 = vpop.f32.mrb[0].mxu0
  %v354 = vpop.f32.mrb[0].mxu0
  %v355 = vadd.f32 0.0, %v354
  %v356 = vpop.f32.mrb[0].mxu0
  %357 = vmatprep.mubr.bf16.mxu0 0
  %358 = vmatmul.mubr.bf16.gmra.mrb[0].mxu0 %v147
  %v359 = vpop.f32.mrb[0].mxu0
  %v360 = vadd.f32 0.0, %v359
  %v361 = vpop.f32.mrb[0].mxu0
  %v362 = vpop.f32.mrb[0].mxu0
  %v363 = vadd.f32 0.0, %v362
  %v364 = vpop.f32.mrb[0].mxu0
  %365 = vmatprep.mubr.bf16.mxu0 0
  %366 = vmatmul.mubr.bf16.gmra.mrb[0].mxu0 %v148
  %v367 = vpop.f32.mrb[0].mxu0
  %v368 = vadd.f32 0.0, %v367
  %v369 = vpop.f32.mrb[0].mxu0
  %v370 = vpop.f32.mrb[0].mxu0
  %v371 = vadd.f32 0.0, %v370
  %v372 = vpop.f32.mrb[0].mxu0
  %373 = vdwg.mxu0
  %vm374 = vcmp.lt.s32.totalorder %v18, 32
  %v375 = vmax.f32 %v248, 0.0
  %v376 = vmax.f32 %v251, 0.0
  %v377 = vmax.f32 %v256, 0.0
  %v378 = vmax.f32 %v259, 0.0
  %v379 = vmax.f32 %v264, 0.0
  %v380 = vmax.f32 %v267, 0.0
  %v381 = vmax.f32 %v272, 0.0
  %v382 = vmax.f32 %v275, 0.0
  %v383 = vmax.f32 %v280, 0.0
  %v384 = vmax.f32 %v283, 0.0
  %v385 = vmax.f32 %v288, 0.0
  %v386 = vmax.f32 %v291, 0.0
  %v387 = vmax.f32 %v296, 0.0
  %v388 = vmax.f32 %v299, 0.0
  %v389 = vmax.f32 %v304, 0.0
  %v390 = vmax.f32 %v307, 0.0
  %v391 = vmax.f32 %v312, 0.0
  %v392 = vmax.f32 %v315, 0.0
  %v393 = vmax.f32 %v320, 0.0
  %v394 = vmax.f32 %v323, 0.0
  %v395 = vmax.f32 %v328, 0.0
  %v396 = vmax.f32 %v331, 0.0
  %v397 = vmax.f32 %v336, 0.0
  %v398 = vmax.f32 %v339, 0.0
  %v399 = vmax.f32 %v344, 0.0
  %v400 = vmax.f32 %v347, 0.0
  %v401 = vmax.f32 %v352, 0.0
  %v402 = vmax.f32 %v355, 0.0
  %v403 = vmax.f32 %v360, 0.0
  %v404 = vmax.f32 %v363, 0.0
  %v405 = vmax.f32 %v368, 0.0
  %v406 = vmax.f32 %v371, 0.0
  %v407 = vsel %vm374, 1, 0
  %vm408 = vcmp.eq.s32.totalorder %v407, 1
  %v409 = vsel %vm408, %v375, %v248
  %v410 = vsel %vm408, %v376, %v251
  %v411 = vsel %vm408, %v377, %v256
  %v412 = vsel %vm408, %v378, %v259
  %v413 = vsel %vm408, %v379, %v264
  %v414 = vsel %vm408, %v380, %v267
  %v415 = vsel %vm408, %v381, %v272
  %v416 = vsel %vm408, %v382, %v275
  %v417 = vsel %vm408, %v383, %v280
  %v418 = vsel %vm408, %v384, %v283
  %v419 = vsel %vm408, %v385, %v288
  %v420 = vsel %vm408, %v386, %v291
  %v421 = vsel %vm408, %v387, %v296
  %v422 = vsel %vm408, %v388, %v299
  %v423 = vsel %vm408, %v389, %v304
  %v424 = vsel %vm408, %v390, %v307
  %v425 = vsel %vm408, %v391, %v312
  %v426 = vsel %vm408, %v392, %v315
  %v427 = vsel %vm408, %v393, %v320
  %v428 = vsel %vm408, %v394, %v323
  %v429 = vsel %vm408, %v395, %v328
  %v430 = vsel %vm408, %v396, %v331
  %v431 = vsel %vm408, %v397, %v336
  %v432 = vsel %vm408, %v398, %v339
  %v433 = vsel %vm408, %v399, %v344
  %v434 = vsel %vm408, %v400, %v347
  %v435 = vsel %vm408, %v401, %v352
  %v436 = vsel %vm408, %v402, %v355
  %v437 = vsel %vm408, %v403, %v360
  %v438 = vsel %vm408, %v404, %v363
  %v439 = vsel %vm408, %v405, %v368
  %v440 = vsel %vm408, %v406, %v371
  %v441 = vpack.c.bf16 %v410, %v409
  %v442 = vpack.c.bf16 %v412, %v411
  %v443 = vpack.c.bf16 %v414, %v413
  %v444 = vpack.c.bf16 %v416, %v415
  %v445 = vpack.c.bf16 %v418, %v417
  %v446 = vpack.c.bf16 %v420, %v419
  %v447 = vpack.c.bf16 %v422, %v421
  %v448 = vpack.c.bf16 %v424, %v423
  %v449 = vpack.c.bf16 %v426, %v425
  %v450 = vpack.c.bf16 %v428, %v427
  %v451 = vpack.c.bf16 %v430, %v429
  %v452 = vpack.c.bf16 %v432, %v431
  %v453 = vpack.c.bf16 %v434, %v433
  %v454 = vpack.c.bf16 %v436, %v435
  %v455 = vpack.c.bf16 %v438, %v437
  %v456 = vpack.c.bf16 %v440, %v439
  %s457 = scalar_lea.vmem %s3, 64
  %v458 = vld [vmem:[%s457] sm:$0xf]
  %v459 = vld [vmem:[%s457 + $0x4] sm:$0xf]
  %v460 = vld [vmem:[%s457 + $0x8] sm:$0xf]
  %v461 = vld [vmem:[%s457 + $0xc] sm:$0xf]
  %v462 = vld [vmem:[%s457 + $0x10] sm:$0xf]
  %v463 = vld [vmem:[%s457 + $0x14] sm:$0xf]
  %v464 = vld [vmem:[%s457 + $0x18] sm:$0xf]
  %v465 = vld [vmem:[%s457 + $0x1c] sm:$0xf]
  %v466 = vld [vmem:[%s457 + $0x20] sm:$0xf]
  %v467 = vld [vmem:[%s457 + $0x24] sm:$0xf]
  %v468 = vld [vmem:[%s457 + $0x28] sm:$0xf]
  %v469 = vld [vmem:[%s457 + $0x2c] sm:$0xf]
  %v470 = vld [vmem:[%s457 + $0x30] sm:$0xf]
  %v471 = vld [vmem:[%s457 + $0x34] sm:$0xf]
  %v472 = vld [vmem:[%s457 + $0x38] sm:$0xf]
  %v473 = vld [vmem:[%s457 + $0x3c] sm:$0xf]
  %v490 = vunpack.c.l.b16 %v458
  %v491 = vunpack.c.l.b16 %v459
  %v492 = vunpack.c.l.b16 %v460
  %v493 = vunpack.c.l.b16 %v461
  %v494 = vunpack.c.l.b16 %v462
  %v495 = vunpack.c.l.b16 %v463
  %v496 = vunpack.c.l.b16 %v464
  %v497 = vunpack.c.l.b16 %v465
  %v498 = vunpack.c.l.b16 %v466
  %v499 = vunpack.c.l.b16 %v467
  %v500 = vunpack.c.l.b16 %v468
  %v501 = vunpack.c.l.b16 %v469
  %v502 = vunpack.c.l.b16 %v470
  %v503 = vunpack.c.l.b16 %v471
  %v504 = vunpack.c.l.b16 %v472
  %v505 = vunpack.c.l.b16 %v473
  %v506 = vpack.c.b16 %v491, %v490
  %v507 = vpack.c.b16 %v493, %v492
  %v508 = vpack.c.b16 %v495, %v494
  %v509 = vpack.c.b16 %v497, %v496
  %v510 = vpack.c.b16 %v499, %v498
  %v511 = vpack.c.b16 %v501, %v500
  %v512 = vpack.c.b16 %v503, %v502
  %v513 = vpack.c.b16 %v505, %v504
  %522 = vmatprep.subr.bf16.mxu0 0
  %523 = vmatpush1.bf16.msra.mxu0 %v506
  %524 = vmatprep.subr.bf16.mxu0 0
  %525 = vmatpush1.bf16.msra.mxu0 %v507
  %526 = vmatprep.subr.bf16.mxu0 0
  %527 = vmatpush1.bf16.msra.mxu0 %v508
  %528 = vmatprep.subr.bf16.mxu0 0
  %529 = vmatpush1.bf16.msra.mxu0 %v509
  %530 = vmatprep.subr.bf16.mxu0 0
  %531 = vmatpush1.bf16.msra.mxu0 %v510
  %532 = vmatprep.subr.bf16.mxu0 0
  %533 = vmatpush1.bf16.msra.mxu0 %v511
  %534 = vmatprep.subr.bf16.mxu0 0
  %535 = vmatpush1.bf16.msra.mxu0 %v512
  %536 = vmatprep.subr.bf16.mxu0 0
  %537 = vmatpush1.bf16.msra.mxu0 %v513
  %538 = vmatprep.subr.bf16.mxu0 0
  %539 = vmatpush1.bf16.msra.mxu0 0
  %540 = vmatprep.subr.bf16.mxu0 0
  %541 = vmatpush1.bf16.msra.mxu0 0
  %542 = vmatprep.subr.bf16.mxu0 0
  %543 = vmatpush1.bf16.msra.mxu0 0
  %544 = vmatprep.subr.bf16.mxu0 0
  %545 = vmatpush1.bf16.msra.mxu0 0
  %546 = vmatprep.subr.bf16.mxu0 0
  %547 = vmatpush1.bf16.msra.mxu0 0
  %548 = vmatprep.subr.bf16.mxu0 0
  %549 = vmatpush1.bf16.msra.mxu0 0
  %550 = vmatprep.subr.bf16.mxu0 0
  %551 = vmatpush1.bf16.msra.mxu0 0
  %552 = vmatprep.subr.bf16.mxu0 0
  %553 = vmatpush1.bf16.msra.mxu0 0
  %554 = vmatprep.mubr.bf16.mxu0 0
  %555 = vmatmul.mubr.bf16.gmra.mrb[0].mxu0 %v441
  %v556 = vpop.f32.mrb[0].mxu0
  %v557 = vadd.f32 0.0, %v556
  %v558 = vpop.f32.mrb[0].mxu0
  %v559 = vpop.f32.mrb[0].mxu0
  %v560 = vadd.f32 0.0, %v559
  %v561 = vpop.f32.mrb[0].mxu0
  %562 = vmatprep.mubr.bf16.mxu0 0
  %563 = vmatmul.mubr.bf16.gmra.mrb[0].mxu0 %v442
  %v564 = vpop.f32.mrb[0].mxu0
  %v565 = vadd.f32 0.0, %v564
  %v566 = vpop.f32.mrb[0].mxu0
  %v567 = vpop.f32.mrb[0].mxu0
  %v568 = vadd.f32 0.0, %v567
  %v569 = vpop.f32.mrb[0].mxu0
  %570 = vmatprep.mubr.bf16.mxu0 0
  %571 = vmatmul.mubr.bf16.gmra.mrb[0].mxu0 %v443
  %v572 = vpop.f32.mrb[0].mxu0
  %v573 = vadd.f32 0.0, %v572
  %v574 = vpop.f32.mrb[0].mxu0
  %v575 = vpop.f32.mrb[0].mxu0
  %v576 = vadd.f32 0.0, %v575
  %v577 = vpop.f32.mrb[0].mxu0
  %578 = vmatprep.mubr.bf16.mxu0 0
  %579 = vmatmul.mubr.bf16.gmra.mrb[0].mxu0 %v444
  %v580 = vpop.f32.mrb[0].mxu0
  %v581 = vadd.f32 0.0, %v580
  %v582 = vpop.f32.mrb[0].mxu0
  %v583 = vpop.f32.mrb[0].mxu0
  %v584 = vadd.f32 0.0, %v583
  %v585 = vpop.f32.mrb[0].mxu0
  %586 = vmatprep.mubr.bf16.mxu0 0
  %587 = vmatmul.mubr.bf16.gmra.mrb[0].mxu0 %v445
  %v588 = vpop.f32.mrb[0].mxu0
  %v589 = vadd.f32 0.0, %v588
  %v590 = vpop.f32.mrb[0].mxu0
  %v591 = vpop.f32.mrb[0].mxu0
  %v592 = vadd.f32 0.0, %v591
  %v593 = vpop.f32.mrb[0].mxu0
  %594 = vmatprep.mubr.bf16.mxu0 0
  %595 = vmatmul.mubr.bf16.gmra.mrb[0].mxu0 %v446
  %v596 = vpop.f32.mrb[0].mxu0
  %v597 = vadd.f32 0.0, %v596
  %v598 = vpop.f32.mrb[0].mxu0
  %v599 = vpop.f32.mrb[0].mxu0
  %v600 = vadd.f32 0.0, %v599
  %v601 = vpop.f32.mrb[0].mxu0
  %602 = vmatprep.mubr.bf16.mxu0 0
  %603 = vmatmul.mubr.bf16.gmra.mrb[0].mxu0 %v447
  %v604 = vpop.f32.mrb[0].mxu0
  %v605 = vadd.f32 0.0, %v604
  %v606 = vpop.f32.mrb[0].mxu0
  %v607 = vpop.f32.mrb[0].mxu0
  %v608 = vadd.f32 0.0, %v607
  %v609 = vpop.f32.mrb[0].mxu0
  %610 = vmatprep.mubr.bf16.mxu0 0
  %611 = vmatmul.mubr.bf16.gmra.mrb[0].mxu0 %v448
  %v612 = vpop.f32.mrb[0].mxu0
  %v613 = vadd.f32 0.0, %v612
  %v614 = vpop.f32.mrb[0].mxu0
  %v615 = vpop.f32.mrb[0].mxu0
  %v616 = vadd.f32 0.0, %v615
  %v617 = vpop.f32.mrb[0].mxu0
  %618 = vmatprep.mubr.bf16.mxu0 0
  %619 = vmatmul.mubr.bf16.gmra.mrb[0].mxu0 %v449
  %v620 = vpop.f32.mrb[0].mxu0
  %v621 = vadd.f32 0.0, %v620
  %v622 = vpop.f32.mrb[0].mxu0
  %v623 = vpop.f32.mrb[0].mxu0
  %v624 = vadd.f32 0.0, %v623
  %v625 = vpop.f32.mrb[0].mxu0
  %626 = vmatprep.mubr.bf16.mxu0 0
  %627 = vmatmul.mubr.bf16.gmra.mrb[0].mxu0 %v450
  %v628 = vpop.f32.mrb[0].mxu0
  %v629 = vadd.f32 0.0, %v628
  %v630 = vpop.f32.mrb[0].mxu0
  %v631 = vpop.f32.mrb[0].mxu0
  %v632 = vadd.f32 0.0, %v631
  %v633 = vpop.f32.mrb[0].mxu0
  %634 = vmatprep.mubr.bf16.mxu0 0
  %635 = vmatmul.mubr.bf16.gmra.mrb[0].mxu0 %v451
  %v636 = vpop.f32.mrb[0].mxu0
  %v637 = vadd.f32 0.0, %v636
  %v638 = vpop.f32.mrb[0].mxu0
  %v639 = vpop.f32.mrb[0].mxu0
  %v640 = vadd.f32 0.0, %v639
  %v641 = vpop.f32.mrb[0].mxu0
  %642 = vmatprep.mubr.bf16.mxu0 0
  %643 = vmatmul.mubr.bf16.gmra.mrb[0].mxu0 %v452
  %v644 = vpop.f32.mrb[0].mxu0
  %v645 = vadd.f32 0.0, %v644
  %v646 = vpop.f32.mrb[0].mxu0
  %v647 = vpop.f32.mrb[0].mxu0
  %v648 = vadd.f32 0.0, %v647
  %v649 = vpop.f32.mrb[0].mxu0
  %650 = vmatprep.mubr.bf16.mxu0 0
  %651 = vmatmul.mubr.bf16.gmra.mrb[0].mxu0 %v453
  %v652 = vpop.f32.mrb[0].mxu0
  %v653 = vadd.f32 0.0, %v652
  %v654 = vpop.f32.mrb[0].mxu0
  %v655 = vpop.f32.mrb[0].mxu0
  %v656 = vadd.f32 0.0, %v655
  %v657 = vpop.f32.mrb[0].mxu0
  %658 = vmatprep.mubr.bf16.mxu0 0
  %659 = vmatmul.mubr.bf16.gmra.mrb[0].mxu0 %v454
  %v660 = vpop.f32.mrb[0].mxu0
  %v661 = vadd.f32 0.0, %v660
  %v662 = vpop.f32.mrb[0].mxu0
  %v663 = vpop.f32.mrb[0].mxu0
  %v664 = vadd.f32 0.0, %v663
  %v665 = vpop.f32.mrb[0].mxu0
  %666 = vmatprep.mubr.bf16.mxu0 0
  %667 = vmatmul.mubr.bf16.gmra.mrb[0].mxu0 %v455
  %v668 = vpop.f32.mrb[0].mxu0
  %v669 = vadd.f32 0.0, %v668
  %v670 = vpop.f32.mrb[0].mxu0
  %v671 = vpop.f32.mrb[0].mxu0
  %v672 = vadd.f32 0.0, %v671
  %v673 = vpop.f32.mrb[0].mxu0
  %674 = vmatprep.mubr.bf16.mxu0 0
  %675 = vmatmul.mubr.bf16.gmra.mrb[0].mxu0 %v456
  %v676 = vpop.f32.mrb[0].mxu0
  %v677 = vadd.f32 0.0, %v676
  %v678 = vpop.f32.mrb[0].mxu0
  %v679 = vpop.f32.mrb[0].mxu0
  %v680 = vadd.f32 0.0, %v679
  %v681 = vpop.f32.mrb[0].mxu0
  %682 = vdwg.mxu0
  %vm683 = vcmp.lt.s32.totalorder %v18, 12
  %vm684 = vcmp.ge.s32.totalorder %v18, 45
  %vm685 = vcmp.lt.s32.totalorder %v18, 109
  %vm686 = vmand %vm684, %vm685
  %vm687 = vmor %vm683, %vm686
  %v688 = vtanh.pop %v557
  %v689 = vtanh.pop %v560
  %v690 = vtanh.pop %v565
  %v691 = vtanh.pop %v568
  %v692 = vtanh.pop %v573
  %v693 = vtanh.pop %v576
  %v694 = vtanh.pop %v581
  %v695 = vtanh.pop %v584
  %v696 = vtanh.pop %v589
  %v697 = vtanh.pop %v592
  %v698 = vtanh.pop %v597
  %v699 = vtanh.pop %v600
  %v700 = vtanh.pop %v605
  %v701 = vtanh.pop %v608
  %v702 = vtanh.pop %v613
  %v703 = vtanh.pop %v616
  %v704 = vtanh.pop %v621
  %v705 = vtanh.pop %v624
  %v706 = vtanh.pop %v629
  %v707 = vtanh.pop %v632
  %v708 = vtanh.pop %v637
  %v709 = vtanh.pop %v640
  %v710 = vtanh.pop %v645
  %v711 = vtanh.pop %v648
  %v712 = vtanh.pop %v653
  %v713 = vtanh.pop %v656
  %v714 = vtanh.pop %v661
  %v715 = vtanh.pop %v664
  %v716 = vtanh.pop %v669
  %v717 = vtanh.pop %v672
  %v718 = vtanh.pop %v677
  %v719 = vtanh.pop %v680
  %v720 = vsel %vm687, 1, 0
  %vm721 = vcmp.eq.s32.totalorder %v720, 1
  %v722 = vsel %vm721, %v688, %v557
  %v723 = vsel %vm721, %v689, %v560
  %v724 = vsel %vm721, %v690, %v565
  %v725 = vsel %vm721, %v691, %v568
  %v726 = vsel %vm721, %v692, %v573
  %v727 = vsel %vm721, %v693, %v576
  %v728 = vsel %vm721, %v694, %v581
  %v729 = vsel %vm721, %v695, %v584
  %v730 = vsel %vm721, %v696, %v589
  %v731 = vsel %vm721, %v697, %v592
  %v732 = vsel %vm721, %v698, %v597
  %v733 = vsel %vm721, %v699, %v600
  %v734 = vsel %vm721, %v700, %v605
  %v735 = vsel %vm721, %v701, %v608
  %v736 = vsel %vm721, %v702, %v613
  %v737 = vsel %vm721, %v703, %v616
  %v738 = vsel %vm721, %v704, %v621
  %v739 = vsel %vm721, %v705, %v624
  %v740 = vsel %vm721, %v706, %v629
  %v741 = vsel %vm721, %v707, %v632
  %v742 = vsel %vm721, %v708, %v637
  %v743 = vsel %vm721, %v709, %v640
  %v744 = vsel %vm721, %v710, %v645
  %v745 = vsel %vm721, %v711, %v648
  %v746 = vsel %vm721, %v712, %v653
  %v747 = vsel %vm721, %v713, %v656
  %v748 = vsel %vm721, %v714, %v661
  %v749 = vsel %vm721, %v715, %v664
  %v750 = vsel %vm721, %v716, %v669
  %v751 = vsel %vm721, %v717, %v672
  %v752 = vsel %vm721, %v718, %v677
  %v753 = vsel %vm721, %v719, %v680
  %v754 = vpack.c.bf16 %v723, %v722
  %v755 = vpack.c.bf16 %v725, %v724
  %v756 = vpack.c.bf16 %v727, %v726
  %v757 = vpack.c.bf16 %v729, %v728
  %v758 = vpack.c.bf16 %v731, %v730
  %v759 = vpack.c.bf16 %v733, %v732
  %v760 = vpack.c.bf16 %v735, %v734
  %v761 = vpack.c.bf16 %v737, %v736
  %v762 = vpack.c.bf16 %v739, %v738
  %v763 = vpack.c.bf16 %v741, %v740
  %v764 = vpack.c.bf16 %v743, %v742
  %v765 = vpack.c.bf16 %v745, %v744
  %v766 = vpack.c.bf16 %v747, %v746
  %v767 = vpack.c.bf16 %v749, %v748
  %v768 = vpack.c.bf16 %v751, %v750
  %v769 = vpack.c.bf16 %v753, %v752
  %v770 = vld [vmem:[%s2] sm:$0xf]
  %v771 = vld [vmem:[%s2 + $0x4] sm:$0xf]
  %v772 = vld [vmem:[%s2 + $0x8] sm:$0xf]
  %v773 = vld [vmem:[%s2 + $0xc] sm:$0xf]
  %v774 = vld [vmem:[%s2 + $0x10] sm:$0xf]
  %v775 = vld [vmem:[%s2 + $0x14] sm:$0xf]
  %v776 = vld [vmem:[%s2 + $0x18] sm:$0xf]
  %v777 = vld [vmem:[%s2 + $0x1c] sm:$0xf]
  %v778 = vld [vmem:[%s2 + $0x20] sm:$0xf]
  %v779 = vld [vmem:[%s2 + $0x24] sm:$0xf]
  %v780 = vld [vmem:[%s2 + $0x28] sm:$0xf]
  %v781 = vld [vmem:[%s2 + $0x2c] sm:$0xf]
  %v782 = vld [vmem:[%s2 + $0x30] sm:$0xf]
  %v783 = vld [vmem:[%s2 + $0x34] sm:$0xf]
  %v784 = vld [vmem:[%s2 + $0x38] sm:$0xf]
  %v785 = vld [vmem:[%s2 + $0x3c] sm:$0xf]
  %v786 = vld [vmem:[%s2 + $0x40] sm:$0xf]
  %v787 = vld [vmem:[%s2 + $0x44] sm:$0xf]
  %v788 = vld [vmem:[%s2 + $0x48] sm:$0xf]
  %v789 = vld [vmem:[%s2 + $0x4c] sm:$0xf]
  %v790 = vld [vmem:[%s2 + $0x50] sm:$0xf]
  %v791 = vld [vmem:[%s2 + $0x54] sm:$0xf]
  %v792 = vld [vmem:[%s2 + $0x58] sm:$0xf]
  %v793 = vld [vmem:[%s2 + $0x5c] sm:$0xf]
  %v794 = vld [vmem:[%s2 + $0x60] sm:$0xf]
  %v795 = vld [vmem:[%s2 + $0x64] sm:$0xf]
  %v796 = vld [vmem:[%s2 + $0x68] sm:$0xf]
  %v797 = vld [vmem:[%s2 + $0x6c] sm:$0xf]
  %v798 = vld [vmem:[%s2 + $0x70] sm:$0xf]
  %v799 = vld [vmem:[%s2 + $0x74] sm:$0xf]
  %v800 = vld [vmem:[%s2 + $0x78] sm:$0xf]
  %v801 = vld [vmem:[%s2 + $0x7c] sm:$0xf]
  %s802 = scalar_select %p20, 1, 0
  %v803 = vstv %s802
  %vm804 = vcmp.eq.s32.totalorder %v803, 1
  %v837 = vunpack.c.l.b16 %v770
  %v838 = vunpack.c.l.b16 %v771
  %v839 = vunpack.c.l.b16 %v772
  %v840 = vunpack.c.l.b16 %v773
  %v841 = vunpack.c.l.b16 %v774
  %v842 = vunpack.c.l.b16 %v775
  %v843 = vunpack.c.l.b16 %v776
  %v844 = vunpack.c.l.b16 %v777
  %v845 = vunpack.c.l.b16 %v778
  %v846 = vunpack.c.l.b16 %v779
  %v847 = vunpack.c.l.b16 %v780
  %v848 = vunpack.c.l.b16 %v781
  %v849 = vunpack.c.l.b16 %v782
  %v850 = vunpack.c.l.b16 %v783
  %v851 = vunpack.c.l.b16 %v784
  %v852 = vunpack.c.l.b16 %v785
  %v853 = vunpack.c.l.b16 %v786
  %v854 = vunpack.c.l.b16 %v787
  %v855 = vunpack.c.l.b16 %v788
  %v856 = vunpack.c.l.b16 %v789
  %v857 = vunpack.c.l.b16 %v790
  %v858 = vunpack.c.l.b16 %v791
  %v859 = vunpack.c.l.b16 %v792
  %v860 = vunpack.c.l.b16 %v793
  %v861 = vunpack.c.l.b16 %v794
  %v862 = vunpack.c.l.b16 %v795
  %v863 = vunpack.c.l.b16 %v796
  %v864 = vunpack.c.l.b16 %v797
  %v865 = vunpack.c.l.b16 %v798
  %v866 = vunpack.c.l.b16 %v799
  %v867 = vunpack.c.l.b16 %v800
  %v868 = vunpack.c.l.b16 %v801
  %v869 = vpack.c.b16 %v838, %v837
  %v870 = vpack.c.b16 %v840, %v839
  %v871 = vpack.c.b16 %v842, %v841
  %v872 = vpack.c.b16 %v844, %v843
  %v873 = vpack.c.b16 %v846, %v845
  %v874 = vpack.c.b16 %v848, %v847
  %v875 = vpack.c.b16 %v850, %v849
  %v876 = vpack.c.b16 %v852, %v851
  %v877 = vpack.c.b16 %v854, %v853
  %v878 = vpack.c.b16 %v856, %v855
  %v879 = vpack.c.b16 %v858, %v857
  %v880 = vpack.c.b16 %v860, %v859
  %v881 = vpack.c.b16 %v862, %v861
  %v882 = vpack.c.b16 %v864, %v863
  %v883 = vpack.c.b16 %v866, %v865
  %v884 = vpack.c.b16 %v868, %v867
  %v901 = vsel %vm804, %v754, %v869
  %v902 = vsel %vm804, %v755, %v870
  %v903 = vsel %vm804, %v756, %v871
  %v904 = vsel %vm804, %v757, %v872
  %v905 = vsel %vm804, %v758, %v873
  %v906 = vsel %vm804, %v759, %v874
  %v907 = vsel %vm804, %v760, %v875
  %v908 = vsel %vm804, %v761, %v876
  %v909 = vsel %vm804, %v762, %v877
  %v910 = vsel %vm804, %v763, %v878
  %v911 = vsel %vm804, %v764, %v879
  %v912 = vsel %vm804, %v765, %v880
  %v913 = vsel %vm804, %v766, %v881
  %v914 = vsel %vm804, %v767, %v882
  %v915 = vsel %vm804, %v768, %v883
  %v916 = vsel %vm804, %v769, %v884
  %s917 = scalar_lea.vmem %s3, 128
  %v918 = vld [vmem:[%s917] sm:$0xf]
  %v919 = vld [vmem:[%s917 + $0x4] sm:$0xf]
  %v920 = vld [vmem:[%s917 + $0x8] sm:$0xf]
  %v921 = vld [vmem:[%s917 + $0xc] sm:$0xf]
  %v922 = vld [vmem:[%s917 + $0x10] sm:$0xf]
  %v923 = vld [vmem:[%s917 + $0x14] sm:$0xf]
  %v924 = vld [vmem:[%s917 + $0x18] sm:$0xf]
  %v925 = vld [vmem:[%s917 + $0x1c] sm:$0xf]
  %v926 = vld [vmem:[%s917 + $0x20] sm:$0xf]
  %v927 = vld [vmem:[%s917 + $0x24] sm:$0xf]
  %v928 = vld [vmem:[%s917 + $0x28] sm:$0xf]
  %v929 = vld [vmem:[%s917 + $0x2c] sm:$0xf]
  %v930 = vld [vmem:[%s917 + $0x30] sm:$0xf]
  %v931 = vld [vmem:[%s917 + $0x34] sm:$0xf]
  %v932 = vld [vmem:[%s917 + $0x38] sm:$0xf]
  %v933 = vld [vmem:[%s917 + $0x3c] sm:$0xf]
  %v950 = vunpack.c.l.b16 %v918
  %v951 = vunpack.c.l.b16 %v919
  %v952 = vunpack.c.l.b16 %v920
  %v953 = vunpack.c.l.b16 %v921
  %v954 = vunpack.c.l.b16 %v922
  %v955 = vunpack.c.l.b16 %v923
  %v956 = vunpack.c.l.b16 %v924
  %v957 = vunpack.c.l.b16 %v925
  %v958 = vunpack.c.l.b16 %v926
  %v959 = vunpack.c.l.b16 %v927
  %v960 = vunpack.c.l.b16 %v928
  %v961 = vunpack.c.l.b16 %v929
  %v962 = vunpack.c.l.b16 %v930
  %v963 = vunpack.c.l.b16 %v931
  %v964 = vunpack.c.l.b16 %v932
  %v965 = vunpack.c.l.b16 %v933
  %v966 = vpack.c.b16 %v951, %v950
  %v967 = vpack.c.b16 %v953, %v952
  %v968 = vpack.c.b16 %v955, %v954
  %v969 = vpack.c.b16 %v957, %v956
  %v970 = vpack.c.b16 %v959, %v958
  %v971 = vpack.c.b16 %v961, %v960
  %v972 = vpack.c.b16 %v963, %v962
  %v973 = vpack.c.b16 %v965, %v964
  %982 = vmatprep.subr.bf16.mxu0 0
  %983 = vmatpush1.bf16.msra.mxu0 %v966
  %984 = vmatprep.subr.bf16.mxu0 0
  %985 = vmatpush1.bf16.msra.mxu0 %v967
  %986 = vmatprep.subr.bf16.mxu0 0
  %987 = vmatpush1.bf16.msra.mxu0 %v968
  %988 = vmatprep.subr.bf16.mxu0 0
  %989 = vmatpush1.bf16.msra.mxu0 %v969
  %990 = vmatprep.subr.bf16.mxu0 0
  %991 = vmatpush1.bf16.msra.mxu0 %v970
  %992 = vmatprep.subr.bf16.mxu0 0
  %993 = vmatpush1.bf16.msra.mxu0 %v971
  %994 = vmatprep.subr.bf16.mxu0 0
  %995 = vmatpush1.bf16.msra.mxu0 %v972
  %996 = vmatprep.subr.bf16.mxu0 0
  %997 = vmatpush1.bf16.msra.mxu0 %v973
  %998 = vmatprep.subr.bf16.mxu0 0
  %999 = vmatpush1.bf16.msra.mxu0 0
  %1000 = vmatprep.subr.bf16.mxu0 0
  %1001 = vmatpush1.bf16.msra.mxu0 0
  %1002 = vmatprep.subr.bf16.mxu0 0
  %1003 = vmatpush1.bf16.msra.mxu0 0
  %1004 = vmatprep.subr.bf16.mxu0 0
  %1005 = vmatpush1.bf16.msra.mxu0 0
  %1006 = vmatprep.subr.bf16.mxu0 0
  %1007 = vmatpush1.bf16.msra.mxu0 0
  %1008 = vmatprep.subr.bf16.mxu0 0
  %1009 = vmatpush1.bf16.msra.mxu0 0
  %1010 = vmatprep.subr.bf16.mxu0 0
  %1011 = vmatpush1.bf16.msra.mxu0 0
  %1012 = vmatprep.subr.bf16.mxu0 0
  %1013 = vmatpush1.bf16.msra.mxu0 0
  %1014 = vmatprep.mubr.bf16.mxu0 0
  %1015 = vmatmul.mubr.bf16.gmra.mrb[0].mxu0 %v901
  %v1016 = vpop.f32.mrb[0].mxu0
  %v1017 = vadd.f32 0.0, %v1016
  %v1018 = vpop.f32.mrb[0].mxu0
  %v1019 = vpop.f32.mrb[0].mxu0
  %v1020 = vadd.f32 0.0, %v1019
  %v1021 = vpop.f32.mrb[0].mxu0
  %1022 = vmatprep.mubr.bf16.mxu0 0
  %1023 = vmatmul.mubr.bf16.gmra.mrb[0].mxu0 %v902
  %v1024 = vpop.f32.mrb[0].mxu0
  %v1025 = vadd.f32 0.0, %v1024
  %v1026 = vpop.f32.mrb[0].mxu0
  %v1027 = vpop.f32.mrb[0].mxu0
  %v1028 = vadd.f32 0.0, %v1027
  %v1029 = vpop.f32.mrb[0].mxu0
  %1030 = vmatprep.mubr.bf16.mxu0 0
  %1031 = vmatmul.mubr.bf16.gmra.mrb[0].mxu0 %v903
  %v1032 = vpop.f32.mrb[0].mxu0
  %v1033 = vadd.f32 0.0, %v1032
  %v1034 = vpop.f32.mrb[0].mxu0
  %v1035 = vpop.f32.mrb[0].mxu0
  %v1036 = vadd.f32 0.0, %v1035
  %v1037 = vpop.f32.mrb[0].mxu0
  %1038 = vmatprep.mubr.bf16.mxu0 0
  %1039 = vmatmul.mubr.bf16.gmra.mrb[0].mxu0 %v904
  %v1040 = vpop.f32.mrb[0].mxu0
  %v1041 = vadd.f32 0.0, %v1040
  %v1042 = vpop.f32.mrb[0].mxu0
  %v1043 = vpop.f32.mrb[0].mxu0
  %v1044 = vadd.f32 0.0, %v1043
  %v1045 = vpop.f32.mrb[0].mxu0
  %1046 = vmatprep.mubr.bf16.mxu0 0
  %1047 = vmatmul.mubr.bf16.gmra.mrb[0].mxu0 %v905
  %v1048 = vpop.f32.mrb[0].mxu0
  %v1049 = vadd.f32 0.0, %v1048
  %v1050 = vpop.f32.mrb[0].mxu0
  %v1051 = vpop.f32.mrb[0].mxu0
  %v1052 = vadd.f32 0.0, %v1051
  %v1053 = vpop.f32.mrb[0].mxu0
  %1054 = vmatprep.mubr.bf16.mxu0 0
  %1055 = vmatmul.mubr.bf16.gmra.mrb[0].mxu0 %v906
  %v1056 = vpop.f32.mrb[0].mxu0
  %v1057 = vadd.f32 0.0, %v1056
  %v1058 = vpop.f32.mrb[0].mxu0
  %v1059 = vpop.f32.mrb[0].mxu0
  %v1060 = vadd.f32 0.0, %v1059
  %v1061 = vpop.f32.mrb[0].mxu0
  %1062 = vmatprep.mubr.bf16.mxu0 0
  %1063 = vmatmul.mubr.bf16.gmra.mrb[0].mxu0 %v907
  %v1064 = vpop.f32.mrb[0].mxu0
  %v1065 = vadd.f32 0.0, %v1064
  %v1066 = vpop.f32.mrb[0].mxu0
  %v1067 = vpop.f32.mrb[0].mxu0
  %v1068 = vadd.f32 0.0, %v1067
  %v1069 = vpop.f32.mrb[0].mxu0
  %1070 = vmatprep.mubr.bf16.mxu0 0
  %1071 = vmatmul.mubr.bf16.gmra.mrb[0].mxu0 %v908
  %v1072 = vpop.f32.mrb[0].mxu0
  %v1073 = vadd.f32 0.0, %v1072
  %v1074 = vpop.f32.mrb[0].mxu0
  %v1075 = vpop.f32.mrb[0].mxu0
  %v1076 = vadd.f32 0.0, %v1075
  %v1077 = vpop.f32.mrb[0].mxu0
  %1078 = vmatprep.mubr.bf16.mxu0 0
  %1079 = vmatmul.mubr.bf16.gmra.mrb[0].mxu0 %v909
  %v1080 = vpop.f32.mrb[0].mxu0
  %v1081 = vadd.f32 0.0, %v1080
  %v1082 = vpop.f32.mrb[0].mxu0
  %v1083 = vpop.f32.mrb[0].mxu0
  %v1084 = vadd.f32 0.0, %v1083
  %v1085 = vpop.f32.mrb[0].mxu0
  %1086 = vmatprep.mubr.bf16.mxu0 0
  %1087 = vmatmul.mubr.bf16.gmra.mrb[0].mxu0 %v910
  %v1088 = vpop.f32.mrb[0].mxu0
  %v1089 = vadd.f32 0.0, %v1088
  %v1090 = vpop.f32.mrb[0].mxu0
  %v1091 = vpop.f32.mrb[0].mxu0
  %v1092 = vadd.f32 0.0, %v1091
  %v1093 = vpop.f32.mrb[0].mxu0
  %1094 = vmatprep.mubr.bf16.mxu0 0
  %1095 = vmatmul.mubr.bf16.gmra.mrb[0].mxu0 %v911
  %v1096 = vpop.f32.mrb[0].mxu0
  %v1097 = vadd.f32 0.0, %v1096
  %v1098 = vpop.f32.mrb[0].mxu0
  %v1099 = vpop.f32.mrb[0].mxu0
  %v1100 = vadd.f32 0.0, %v1099
  %v1101 = vpop.f32.mrb[0].mxu0
  %1102 = vmatprep.mubr.bf16.mxu0 0
  %1103 = vmatmul.mubr.bf16.gmra.mrb[0].mxu0 %v912
  %v1104 = vpop.f32.mrb[0].mxu0
  %v1105 = vadd.f32 0.0, %v1104
  %v1106 = vpop.f32.mrb[0].mxu0
  %v1107 = vpop.f32.mrb[0].mxu0
  %v1108 = vadd.f32 0.0, %v1107
  %v1109 = vpop.f32.mrb[0].mxu0
  %1110 = vmatprep.mubr.bf16.mxu0 0
  %1111 = vmatmul.mubr.bf16.gmra.mrb[0].mxu0 %v913
  %v1112 = vpop.f32.mrb[0].mxu0
  %v1113 = vadd.f32 0.0, %v1112
  %v1114 = vpop.f32.mrb[0].mxu0
  %v1115 = vpop.f32.mrb[0].mxu0
  %v1116 = vadd.f32 0.0, %v1115
  %v1117 = vpop.f32.mrb[0].mxu0
  %1118 = vmatprep.mubr.bf16.mxu0 0
  %1119 = vmatmul.mubr.bf16.gmra.mrb[0].mxu0 %v914
  %v1120 = vpop.f32.mrb[0].mxu0
  %v1121 = vadd.f32 0.0, %v1120
  %v1122 = vpop.f32.mrb[0].mxu0
  %v1123 = vpop.f32.mrb[0].mxu0
  %v1124 = vadd.f32 0.0, %v1123
  %v1125 = vpop.f32.mrb[0].mxu0
  %1126 = vmatprep.mubr.bf16.mxu0 0
  %1127 = vmatmul.mubr.bf16.gmra.mrb[0].mxu0 %v915
  %v1128 = vpop.f32.mrb[0].mxu0
  %v1129 = vadd.f32 0.0, %v1128
  %v1130 = vpop.f32.mrb[0].mxu0
  %v1131 = vpop.f32.mrb[0].mxu0
  %v1132 = vadd.f32 0.0, %v1131
  %v1133 = vpop.f32.mrb[0].mxu0
  %1134 = vmatprep.mubr.bf16.mxu0 0
  %1135 = vmatmul.mubr.bf16.gmra.mrb[0].mxu0 %v916
  %v1136 = vpop.f32.mrb[0].mxu0
  %v1137 = vadd.f32 0.0, %v1136
  %v1138 = vpop.f32.mrb[0].mxu0
  %v1139 = vpop.f32.mrb[0].mxu0
  %v1140 = vadd.f32 0.0, %v1139
  %v1141 = vpop.f32.mrb[0].mxu0
  %1142 = vdwg.mxu0
  %v1143 = vtanh.pop %v1017
  %v1144 = vtanh.pop %v1020
  %v1145 = vtanh.pop %v1025
  %v1146 = vtanh.pop %v1028
  %v1147 = vtanh.pop %v1033
  %v1148 = vtanh.pop %v1036
  %v1149 = vtanh.pop %v1041
  %v1150 = vtanh.pop %v1044
  %v1151 = vtanh.pop %v1049
  %v1152 = vtanh.pop %v1052
  %v1153 = vtanh.pop %v1057
  %v1154 = vtanh.pop %v1060
  %v1155 = vtanh.pop %v1065
  %v1156 = vtanh.pop %v1068
  %v1157 = vtanh.pop %v1073
  %v1158 = vtanh.pop %v1076
  %v1159 = vtanh.pop %v1081
  %v1160 = vtanh.pop %v1084
  %v1161 = vtanh.pop %v1089
  %v1162 = vtanh.pop %v1092
  %v1163 = vtanh.pop %v1097
  %v1164 = vtanh.pop %v1100
  %v1165 = vtanh.pop %v1105
  %v1166 = vtanh.pop %v1108
  %v1167 = vtanh.pop %v1113
  %v1168 = vtanh.pop %v1116
  %v1169 = vtanh.pop %v1121
  %v1170 = vtanh.pop %v1124
  %v1171 = vtanh.pop %v1129
  %v1172 = vtanh.pop %v1132
  %v1173 = vtanh.pop %v1137
  %v1174 = vtanh.pop %v1140
  %v1175 = vpack.c.bf16 %v1144, %v1143
  %v1176 = vpack.c.bf16 %v1146, %v1145
  %v1177 = vpack.c.bf16 %v1148, %v1147
  %v1178 = vpack.c.bf16 %v1150, %v1149
  %v1179 = vpack.c.bf16 %v1152, %v1151
  %v1180 = vpack.c.bf16 %v1154, %v1153
  %v1181 = vpack.c.bf16 %v1156, %v1155
  %v1182 = vpack.c.bf16 %v1158, %v1157
  %v1183 = vpack.c.bf16 %v1160, %v1159
  %v1184 = vpack.c.bf16 %v1162, %v1161
  %v1185 = vpack.c.bf16 %v1164, %v1163
  %v1186 = vpack.c.bf16 %v1166, %v1165
  %v1187 = vpack.c.bf16 %v1168, %v1167
  %v1188 = vpack.c.bf16 %v1170, %v1169
  %v1189 = vpack.c.bf16 %v1172, %v1171
  %v1190 = vpack.c.bf16 %v1174, %v1173
  %s1191 = scalar_lea.vmem %s3, 192
  %v1192 = vld [vmem:[%s1191] sm:$0xf]
  %v1193 = vld [vmem:[%s1191 + $0x4] sm:$0xf]
  %v1194 = vld [vmem:[%s1191 + $0x8] sm:$0xf]
  %v1195 = vld [vmem:[%s1191 + $0xc] sm:$0xf]
  %v1196 = vld [vmem:[%s1191 + $0x10] sm:$0xf]
  %v1197 = vld [vmem:[%s1191 + $0x14] sm:$0xf]
  %v1198 = vld [vmem:[%s1191 + $0x18] sm:$0xf]
  %v1199 = vld [vmem:[%s1191 + $0x1c] sm:$0xf]
  %v1200 = vld [vmem:[%s1191 + $0x20] sm:$0xf]
  %v1201 = vld [vmem:[%s1191 + $0x24] sm:$0xf]
  %v1202 = vld [vmem:[%s1191 + $0x28] sm:$0xf]
  %v1203 = vld [vmem:[%s1191 + $0x2c] sm:$0xf]
  %v1204 = vld [vmem:[%s1191 + $0x30] sm:$0xf]
  %v1205 = vld [vmem:[%s1191 + $0x34] sm:$0xf]
  %v1206 = vld [vmem:[%s1191 + $0x38] sm:$0xf]
  %v1207 = vld [vmem:[%s1191 + $0x3c] sm:$0xf]
  %s1208 = scalar_lea.vmem %s3, 256
  %v1209 = vld [vmem:[%s1208] sm:$0xf]
  %v1210 = vld [vmem:[%s1208 + $0x4] sm:$0xf]
  %v1211 = vld [vmem:[%s1208 + $0x8] sm:$0xf]
  %v1212 = vld [vmem:[%s1208 + $0xc] sm:$0xf]
  %v1213 = vld [vmem:[%s1208 + $0x10] sm:$0xf]
  %v1214 = vld [vmem:[%s1208 + $0x14] sm:$0xf]
  %v1215 = vld [vmem:[%s1208 + $0x18] sm:$0xf]
  %v1216 = vld [vmem:[%s1208 + $0x1c] sm:$0xf]
  %v1217 = vld [vmem:[%s1208 + $0x20] sm:$0xf]
  %v1218 = vld [vmem:[%s1208 + $0x24] sm:$0xf]
  %v1219 = vld [vmem:[%s1208 + $0x28] sm:$0xf]
  %v1220 = vld [vmem:[%s1208 + $0x2c] sm:$0xf]
  %v1221 = vld [vmem:[%s1208 + $0x30] sm:$0xf]
  %v1222 = vld [vmem:[%s1208 + $0x34] sm:$0xf]
  %v1223 = vld [vmem:[%s1208 + $0x38] sm:$0xf]
  %v1224 = vld [vmem:[%s1208 + $0x3c] sm:$0xf]
  %v1241 = vunpack.c.l.b16 %v1209
  %v1242 = vunpack.c.l.b16 %v1210
  %v1243 = vunpack.c.l.b16 %v1211
  %v1244 = vunpack.c.l.b16 %v1212
  %v1245 = vunpack.c.l.b16 %v1213
  %v1246 = vunpack.c.l.b16 %v1214
  %v1247 = vunpack.c.l.b16 %v1215
  %v1248 = vunpack.c.l.b16 %v1216
  %v1249 = vunpack.c.l.b16 %v1217
  %v1250 = vunpack.c.l.b16 %v1218
  %v1251 = vunpack.c.l.b16 %v1219
  %v1252 = vunpack.c.l.b16 %v1220
  %v1253 = vunpack.c.l.b16 %v1221
  %v1254 = vunpack.c.l.b16 %v1222
  %v1255 = vunpack.c.l.b16 %v1223
  %v1256 = vunpack.c.l.b16 %v1224
  %v1257 = vpack.c.b16 %v1242, %v1241
  %v1258 = vpack.c.b16 %v1244, %v1243
  %v1259 = vpack.c.b16 %v1246, %v1245
  %v1260 = vpack.c.b16 %v1248, %v1247
  %v1261 = vpack.c.b16 %v1250, %v1249
  %v1262 = vpack.c.b16 %v1252, %v1251
  %v1263 = vpack.c.b16 %v1254, %v1253
  %v1264 = vpack.c.b16 %v1256, %v1255
  %1273 = vmatprep.subr.bf16.mxu0 0
  %1274 = vmatpush1.bf16.msra.mxu0 %v1257
  %1275 = vmatprep.subr.bf16.mxu0 0
  %1276 = vmatpush1.bf16.msra.mxu0 %v1258
  %1277 = vmatprep.subr.bf16.mxu0 0
  %1278 = vmatpush1.bf16.msra.mxu0 %v1259
  %1279 = vmatprep.subr.bf16.mxu0 0
  %1280 = vmatpush1.bf16.msra.mxu0 %v1260
  %1281 = vmatprep.subr.bf16.mxu0 0
  %1282 = vmatpush1.bf16.msra.mxu0 %v1261
  %1283 = vmatprep.subr.bf16.mxu0 0
  %1284 = vmatpush1.bf16.msra.mxu0 %v1262
  %1285 = vmatprep.subr.bf16.mxu0 0
  %1286 = vmatpush1.bf16.msra.mxu0 %v1263
  %1287 = vmatprep.subr.bf16.mxu0 0
  %1288 = vmatpush1.bf16.msra.mxu0 %v1264
  %1289 = vmatprep.subr.bf16.mxu0 0
  %1290 = vmatpush1.bf16.msra.mxu0 0
  %1291 = vmatprep.subr.bf16.mxu0 0
  %1292 = vmatpush1.bf16.msra.mxu0 0
  %1293 = vmatprep.subr.bf16.mxu0 0
  %1294 = vmatpush1.bf16.msra.mxu0 0
  %1295 = vmatprep.subr.bf16.mxu0 0
  %1296 = vmatpush1.bf16.msra.mxu0 0
  %1297 = vmatprep.subr.bf16.mxu0 0
  %1298 = vmatpush1.bf16.msra.mxu0 0
  %1299 = vmatprep.subr.bf16.mxu0 0
  %1300 = vmatpush1.bf16.msra.mxu0 0
  %1301 = vmatprep.subr.bf16.mxu0 0
  %1302 = vmatpush1.bf16.msra.mxu0 0
  %1303 = vmatprep.subr.bf16.mxu0 0
  %1304 = vmatpush1.bf16.msra.mxu0 0
  %1305 = vmatprep.mubr.bf16.mxu0 0
  %1306 = vmatmul.mubr.bf16.gmra.mrb[0].mxu0 %v754
  %v1307 = vpop.f32.mrb[0].mxu0
  %v1308 = vadd.f32 0.0, %v1307
  %v1309 = vpop.f32.mrb[0].mxu0
  %v1310 = vpop.f32.mrb[0].mxu0
  %v1311 = vadd.f32 0.0, %v1310
  %v1312 = vpop.f32.mrb[0].mxu0
  %1313 = vmatprep.mubr.bf16.mxu0 0
  %1314 = vmatmul.mubr.bf16.gmra.mrb[0].mxu0 %v755
  %v1315 = vpop.f32.mrb[0].mxu0
  %v1316 = vadd.f32 0.0, %v1315
  %v1317 = vpop.f32.mrb[0].mxu0
  %v1318 = vpop.f32.mrb[0].mxu0
  %v1319 = vadd.f32 0.0, %v1318
  %v1320 = vpop.f32.mrb[0].mxu0
  %1321 = vmatprep.mubr.bf16.mxu0 0
  %1322 = vmatmul.mubr.bf16.gmra.mrb[0].mxu0 %v756
  %v1323 = vpop.f32.mrb[0].mxu0
  %v1324 = vadd.f32 0.0, %v1323
  %v1325 = vpop.f32.mrb[0].mxu0
  %v1326 = vpop.f32.mrb[0].mxu0
  %v1327 = vadd.f32 0.0, %v1326
  %v1328 = vpop.f32.mrb[0].mxu0
  %1329 = vmatprep.mubr.bf16.mxu0 0
  %1330 = vmatmul.mubr.bf16.gmra.mrb[0].mxu0 %v757
  %v1331 = vpop.f32.mrb[0].mxu0
  %v1332 = vadd.f32 0.0, %v1331
  %v1333 = vpop.f32.mrb[0].mxu0
  %v1334 = vpop.f32.mrb[0].mxu0
  %v1335 = vadd.f32 0.0, %v1334
  %v1336 = vpop.f32.mrb[0].mxu0
  %1337 = vmatprep.mubr.bf16.mxu0 0
  %1338 = vmatmul.mubr.bf16.gmra.mrb[0].mxu0 %v758
  %v1339 = vpop.f32.mrb[0].mxu0
  %v1340 = vadd.f32 0.0, %v1339
  %v1341 = vpop.f32.mrb[0].mxu0
  %v1342 = vpop.f32.mrb[0].mxu0
  %v1343 = vadd.f32 0.0, %v1342
  %v1344 = vpop.f32.mrb[0].mxu0
  %1345 = vmatprep.mubr.bf16.mxu0 0
  %1346 = vmatmul.mubr.bf16.gmra.mrb[0].mxu0 %v759
  %v1347 = vpop.f32.mrb[0].mxu0
  %v1348 = vadd.f32 0.0, %v1347
  %v1349 = vpop.f32.mrb[0].mxu0
  %v1350 = vpop.f32.mrb[0].mxu0
  %v1351 = vadd.f32 0.0, %v1350
  %v1352 = vpop.f32.mrb[0].mxu0
  %1353 = vmatprep.mubr.bf16.mxu0 0
  %1354 = vmatmul.mubr.bf16.gmra.mrb[0].mxu0 %v760
  %v1355 = vpop.f32.mrb[0].mxu0
  %v1356 = vadd.f32 0.0, %v1355
  %v1357 = vpop.f32.mrb[0].mxu0
  %v1358 = vpop.f32.mrb[0].mxu0
  %v1359 = vadd.f32 0.0, %v1358
  %v1360 = vpop.f32.mrb[0].mxu0
  %1361 = vmatprep.mubr.bf16.mxu0 0
  %1362 = vmatmul.mubr.bf16.gmra.mrb[0].mxu0 %v761
  %v1363 = vpop.f32.mrb[0].mxu0
  %v1364 = vadd.f32 0.0, %v1363
  %v1365 = vpop.f32.mrb[0].mxu0
  %v1366 = vpop.f32.mrb[0].mxu0
  %v1367 = vadd.f32 0.0, %v1366
  %v1368 = vpop.f32.mrb[0].mxu0
  %1369 = vmatprep.mubr.bf16.mxu0 0
  %1370 = vmatmul.mubr.bf16.gmra.mrb[0].mxu0 %v762
  %v1371 = vpop.f32.mrb[0].mxu0
  %v1372 = vadd.f32 0.0, %v1371
  %v1373 = vpop.f32.mrb[0].mxu0
  %v1374 = vpop.f32.mrb[0].mxu0
  %v1375 = vadd.f32 0.0, %v1374
  %v1376 = vpop.f32.mrb[0].mxu0
  %1377 = vmatprep.mubr.bf16.mxu0 0
  %1378 = vmatmul.mubr.bf16.gmra.mrb[0].mxu0 %v763
  %v1379 = vpop.f32.mrb[0].mxu0
  %v1380 = vadd.f32 0.0, %v1379
  %v1381 = vpop.f32.mrb[0].mxu0
  %v1382 = vpop.f32.mrb[0].mxu0
  %v1383 = vadd.f32 0.0, %v1382
  %v1384 = vpop.f32.mrb[0].mxu0
  %1385 = vmatprep.mubr.bf16.mxu0 0
  %1386 = vmatmul.mubr.bf16.gmra.mrb[0].mxu0 %v764
  %v1387 = vpop.f32.mrb[0].mxu0
  %v1388 = vadd.f32 0.0, %v1387
  %v1389 = vpop.f32.mrb[0].mxu0
  %v1390 = vpop.f32.mrb[0].mxu0
  %v1391 = vadd.f32 0.0, %v1390
  %v1392 = vpop.f32.mrb[0].mxu0
  %1393 = vmatprep.mubr.bf16.mxu0 0
  %1394 = vmatmul.mubr.bf16.gmra.mrb[0].mxu0 %v765
  %v1395 = vpop.f32.mrb[0].mxu0
  %v1396 = vadd.f32 0.0, %v1395
  %v1397 = vpop.f32.mrb[0].mxu0
  %v1398 = vpop.f32.mrb[0].mxu0
  %v1399 = vadd.f32 0.0, %v1398
  %v1400 = vpop.f32.mrb[0].mxu0
  %1401 = vmatprep.mubr.bf16.mxu0 0
  %1402 = vmatmul.mubr.bf16.gmra.mrb[0].mxu0 %v766
  %v1403 = vpop.f32.mrb[0].mxu0
  %v1404 = vadd.f32 0.0, %v1403
  %v1405 = vpop.f32.mrb[0].mxu0
  %v1406 = vpop.f32.mrb[0].mxu0
  %v1407 = vadd.f32 0.0, %v1406
  %v1408 = vpop.f32.mrb[0].mxu0
  %1409 = vmatprep.mubr.bf16.mxu0 0
  %1410 = vmatmul.mubr.bf16.gmra.mrb[0].mxu0 %v767
  %v1411 = vpop.f32.mrb[0].mxu0
  %v1412 = vadd.f32 0.0, %v1411
  %v1413 = vpop.f32.mrb[0].mxu0
  %v1414 = vpop.f32.mrb[0].mxu0
  %v1415 = vadd.f32 0.0, %v1414
  %v1416 = vpop.f32.mrb[0].mxu0
  %1417 = vmatprep.mubr.bf16.mxu0 0
  %1418 = vmatmul.mubr.bf16.gmra.mrb[0].mxu0 %v768
  %v1419 = vpop.f32.mrb[0].mxu0
  %v1420 = vadd.f32 0.0, %v1419
  %v1421 = vpop.f32.mrb[0].mxu0
  %v1422 = vpop.f32.mrb[0].mxu0
  %v1423 = vadd.f32 0.0, %v1422
  %v1424 = vpop.f32.mrb[0].mxu0
  %1425 = vmatprep.mubr.bf16.mxu0 0
  %1426 = vmatmul.mubr.bf16.gmra.mrb[0].mxu0 %v769
  %v1427 = vpop.f32.mrb[0].mxu0
  %v1428 = vadd.f32 0.0, %v1427
  %v1429 = vpop.f32.mrb[0].mxu0
  %v1430 = vpop.f32.mrb[0].mxu0
  %v1431 = vadd.f32 0.0, %v1430
  %v1432 = vpop.f32.mrb[0].mxu0
  %1433 = vdwg.mxu0
  %v1450 = vunpack.c.l.b16 %v1192
  %v1451 = vunpack.c.l.b16 %v1193
  %v1452 = vunpack.c.l.b16 %v1194
  %v1453 = vunpack.c.l.b16 %v1195
  %v1454 = vunpack.c.l.b16 %v1196
  %v1455 = vunpack.c.l.b16 %v1197
  %v1456 = vunpack.c.l.b16 %v1198
  %v1457 = vunpack.c.l.b16 %v1199
  %v1458 = vunpack.c.l.b16 %v1200
  %v1459 = vunpack.c.l.b16 %v1201
  %v1460 = vunpack.c.l.b16 %v1202
  %v1461 = vunpack.c.l.b16 %v1203
  %v1462 = vunpack.c.l.b16 %v1204
  %v1463 = vunpack.c.l.b16 %v1205
  %v1464 = vunpack.c.l.b16 %v1206
  %v1465 = vunpack.c.l.b16 %v1207
  %v1466 = vpack.c.b16 %v1451, %v1450
  %v1467 = vpack.c.b16 %v1453, %v1452
  %v1468 = vpack.c.b16 %v1455, %v1454
  %v1469 = vpack.c.b16 %v1457, %v1456
  %v1470 = vpack.c.b16 %v1459, %v1458
  %v1471 = vpack.c.b16 %v1461, %v1460
  %v1472 = vpack.c.b16 %v1463, %v1462
  %v1473 = vpack.c.b16 %v1465, %v1464
  %1482 = vmatprep.subr.bf16.mxu0 0
  %1483 = vmatpush1.bf16.msra.mxu0 %v1466
  %1484 = vmatprep.subr.bf16.mxu0 0
  %1485 = vmatpush1.bf16.msra.mxu0 %v1467
  %1486 = vmatprep.subr.bf16.mxu0 0
  %1487 = vmatpush1.bf16.msra.mxu0 %v1468
  %1488 = vmatprep.subr.bf16.mxu0 0
  %1489 = vmatpush1.bf16.msra.mxu0 %v1469
  %1490 = vmatprep.subr.bf16.mxu0 0
  %1491 = vmatpush1.bf16.msra.mxu0 %v1470
  %1492 = vmatprep.subr.bf16.mxu0 0
  %1493 = vmatpush1.bf16.msra.mxu0 %v1471
  %1494 = vmatprep.subr.bf16.mxu0 0
  %1495 = vmatpush1.bf16.msra.mxu0 %v1472
  %1496 = vmatprep.subr.bf16.mxu0 0
  %1497 = vmatpush1.bf16.msra.mxu0 %v1473
  %1498 = vmatprep.subr.bf16.mxu0 0
  %1499 = vmatpush1.bf16.msra.mxu0 0
  %1500 = vmatprep.subr.bf16.mxu0 0
  %1501 = vmatpush1.bf16.msra.mxu0 0
  %1502 = vmatprep.subr.bf16.mxu0 0
  %1503 = vmatpush1.bf16.msra.mxu0 0
  %1504 = vmatprep.subr.bf16.mxu0 0
  %1505 = vmatpush1.bf16.msra.mxu0 0
  %1506 = vmatprep.subr.bf16.mxu0 0
  %1507 = vmatpush1.bf16.msra.mxu0 0
  %1508 = vmatprep.subr.bf16.mxu0 0
  %1509 = vmatpush1.bf16.msra.mxu0 0
  %1510 = vmatprep.subr.bf16.mxu0 0
  %1511 = vmatpush1.bf16.msra.mxu0 0
  %1512 = vmatprep.subr.bf16.mxu0 0
  %1513 = vmatpush1.bf16.msra.mxu0 0
  %1514 = vmatprep.mubr.bf16.mxu0 0
  %1515 = vmatmul.mubr.bf16.gmra.mrb[0].mxu0 %v1175
  %v1516 = vpop.f32.mrb[0].mxu0
  %v1517 = vadd.f32 %v1308, %v1516
  %v1518 = vpop.f32.mrb[0].mxu0
  %v1519 = vpop.f32.mrb[0].mxu0
  %v1520 = vadd.f32 %v1311, %v1519
  %v1521 = vpop.f32.mrb[0].mxu0
  %1522 = vmatprep.mubr.bf16.mxu0 0
  %1523 = vmatmul.mubr.bf16.gmra.mrb[0].mxu0 %v1176
  %v1524 = vpop.f32.mrb[0].mxu0
  %v1525 = vadd.f32 %v1316, %v1524
  %v1526 = vpop.f32.mrb[0].mxu0
  %v1527 = vpop.f32.mrb[0].mxu0
  %v1528 = vadd.f32 %v1319, %v1527
  %v1529 = vpop.f32.mrb[0].mxu0
  %1530 = vmatprep.mubr.bf16.mxu0 0
  %1531 = vmatmul.mubr.bf16.gmra.mrb[0].mxu0 %v1177
  %v1532 = vpop.f32.mrb[0].mxu0
  %v1533 = vadd.f32 %v1324, %v1532
  %v1534 = vpop.f32.mrb[0].mxu0
  %v1535 = vpop.f32.mrb[0].mxu0
  %v1536 = vadd.f32 %v1327, %v1535
  %v1537 = vpop.f32.mrb[0].mxu0
  %1538 = vmatprep.mubr.bf16.mxu0 0
  %1539 = vmatmul.mubr.bf16.gmra.mrb[0].mxu0 %v1178
  %v1540 = vpop.f32.mrb[0].mxu0
  %v1541 = vadd.f32 %v1332, %v1540
  %v1542 = vpop.f32.mrb[0].mxu0
  %v1543 = vpop.f32.mrb[0].mxu0
  %v1544 = vadd.f32 %v1335, %v1543
  %v1545 = vpop.f32.mrb[0].mxu0
  %1546 = vmatprep.mubr.bf16.mxu0 0
  %1547 = vmatmul.mubr.bf16.gmra.mrb[0].mxu0 %v1179
  %v1548 = vpop.f32.mrb[0].mxu0
  %v1549 = vadd.f32 %v1340, %v1548
  %v1550 = vpop.f32.mrb[0].mxu0
  %v1551 = vpop.f32.mrb[0].mxu0
  %v1552 = vadd.f32 %v1343, %v1551
  %v1553 = vpop.f32.mrb[0].mxu0
  %1554 = vmatprep.mubr.bf16.mxu0 0
  %1555 = vmatmul.mubr.bf16.gmra.mrb[0].mxu0 %v1180
  %v1556 = vpop.f32.mrb[0].mxu0
  %v1557 = vadd.f32 %v1348, %v1556
  %v1558 = vpop.f32.mrb[0].mxu0
  %v1559 = vpop.f32.mrb[0].mxu0
  %v1560 = vadd.f32 %v1351, %v1559
  %v1561 = vpop.f32.mrb[0].mxu0
  %1562 = vmatprep.mubr.bf16.mxu0 0
  %1563 = vmatmul.mubr.bf16.gmra.mrb[0].mxu0 %v1181
  %v1564 = vpop.f32.mrb[0].mxu0
  %v1565 = vadd.f32 %v1356, %v1564
  %v1566 = vpop.f32.mrb[0].mxu0
  %v1567 = vpop.f32.mrb[0].mxu0
  %v1568 = vadd.f32 %v1359, %v1567
  %v1569 = vpop.f32.mrb[0].mxu0
  %1570 = vmatprep.mubr.bf16.mxu0 0
  %1571 = vmatmul.mubr.bf16.gmra.mrb[0].mxu0 %v1182
  %v1572 = vpop.f32.mrb[0].mxu0
  %v1573 = vadd.f32 %v1364, %v1572
  %v1574 = vpop.f32.mrb[0].mxu0
  %v1575 = vpop.f32.mrb[0].mxu0
  %v1576 = vadd.f32 %v1367, %v1575
  %v1577 = vpop.f32.mrb[0].mxu0
  %1578 = vmatprep.mubr.bf16.mxu0 0
  %1579 = vmatmul.mubr.bf16.gmra.mrb[0].mxu0 %v1183
  %v1580 = vpop.f32.mrb[0].mxu0
  %v1581 = vadd.f32 %v1372, %v1580
  %v1582 = vpop.f32.mrb[0].mxu0
  %v1583 = vpop.f32.mrb[0].mxu0
  %v1584 = vadd.f32 %v1375, %v1583
  %v1585 = vpop.f32.mrb[0].mxu0
  %1586 = vmatprep.mubr.bf16.mxu0 0
  %1587 = vmatmul.mubr.bf16.gmra.mrb[0].mxu0 %v1184
  %v1588 = vpop.f32.mrb[0].mxu0
  %v1589 = vadd.f32 %v1380, %v1588
  %v1590 = vpop.f32.mrb[0].mxu0
  %v1591 = vpop.f32.mrb[0].mxu0
  %v1592 = vadd.f32 %v1383, %v1591
  %v1593 = vpop.f32.mrb[0].mxu0
  %1594 = vmatprep.mubr.bf16.mxu0 0
  %1595 = vmatmul.mubr.bf16.gmra.mrb[0].mxu0 %v1185
  %v1596 = vpop.f32.mrb[0].mxu0
  %v1597 = vadd.f32 %v1388, %v1596
  %v1598 = vpop.f32.mrb[0].mxu0
  %v1599 = vpop.f32.mrb[0].mxu0
  %v1600 = vadd.f32 %v1391, %v1599
  %v1601 = vpop.f32.mrb[0].mxu0
  %1602 = vmatprep.mubr.bf16.mxu0 0
  %1603 = vmatmul.mubr.bf16.gmra.mrb[0].mxu0 %v1186
  %v1604 = vpop.f32.mrb[0].mxu0
  %v1605 = vadd.f32 %v1396, %v1604
  %v1606 = vpop.f32.mrb[0].mxu0
  %v1607 = vpop.f32.mrb[0].mxu0
  %v1608 = vadd.f32 %v1399, %v1607
  %v1609 = vpop.f32.mrb[0].mxu0
  %1610 = vmatprep.mubr.bf16.mxu0 0
  %1611 = vmatmul.mubr.bf16.gmra.mrb[0].mxu0 %v1187
  %v1612 = vpop.f32.mrb[0].mxu0
  %v1613 = vadd.f32 %v1404, %v1612
  %v1614 = vpop.f32.mrb[0].mxu0
  %v1615 = vpop.f32.mrb[0].mxu0
  %v1616 = vadd.f32 %v1407, %v1615
  %v1617 = vpop.f32.mrb[0].mxu0
  %1618 = vmatprep.mubr.bf16.mxu0 0
  %1619 = vmatmul.mubr.bf16.gmra.mrb[0].mxu0 %v1188
  %v1620 = vpop.f32.mrb[0].mxu0
  %v1621 = vadd.f32 %v1412, %v1620
  %v1622 = vpop.f32.mrb[0].mxu0
  %v1623 = vpop.f32.mrb[0].mxu0
  %v1624 = vadd.f32 %v1415, %v1623
  %v1625 = vpop.f32.mrb[0].mxu0
  %1626 = vmatprep.mubr.bf16.mxu0 0
  %1627 = vmatmul.mubr.bf16.gmra.mrb[0].mxu0 %v1189
  %v1628 = vpop.f32.mrb[0].mxu0
  %v1629 = vadd.f32 %v1420, %v1628
  %v1630 = vpop.f32.mrb[0].mxu0
  %v1631 = vpop.f32.mrb[0].mxu0
  %v1632 = vadd.f32 %v1423, %v1631
  %v1633 = vpop.f32.mrb[0].mxu0
  %1634 = vmatprep.mubr.bf16.mxu0 0
  %1635 = vmatmul.mubr.bf16.gmra.mrb[0].mxu0 %v1190
  %v1636 = vpop.f32.mrb[0].mxu0
  %v1637 = vadd.f32 %v1428, %v1636
  %v1638 = vpop.f32.mrb[0].mxu0
  %v1639 = vpop.f32.mrb[0].mxu0
  %v1640 = vadd.f32 %v1431, %v1639
  %v1641 = vpop.f32.mrb[0].mxu0
  %1642 = vdwg.mxu0
  %v1643 = vpack.c.bf16 %v1520, %v1517
  %v1644 = vpack.c.bf16 %v1528, %v1525
  %v1645 = vpack.c.bf16 %v1536, %v1533
  %v1646 = vpack.c.bf16 %v1544, %v1541
  %v1647 = vpack.c.bf16 %v1552, %v1549
  %v1648 = vpack.c.bf16 %v1560, %v1557
  %v1649 = vpack.c.bf16 %v1568, %v1565
  %v1650 = vpack.c.bf16 %v1576, %v1573
  %v1651 = vpack.c.bf16 %v1584, %v1581
  %v1652 = vpack.c.bf16 %v1592, %v1589
  %v1653 = vpack.c.bf16 %v1600, %v1597
  %v1654 = vpack.c.bf16 %v1608, %v1605
  %v1655 = vpack.c.bf16 %v1616, %v1613
  %v1656 = vpack.c.bf16 %v1624, %v1621
  %v1657 = vpack.c.bf16 %v1632, %v1629
  %v1658 = vpack.c.bf16 %v1640, %v1637
  %v1675 = vunpack.c.l.b16 %v1643
  %v1676 = vunpack.c.h.b16 %v1643
  %v1677 = vunpack.c.l.b16 %v1644
  %v1678 = vunpack.c.h.b16 %v1644
  %v1679 = vunpack.c.l.b16 %v1645
  %v1680 = vunpack.c.h.b16 %v1645
  %v1681 = vunpack.c.l.b16 %v1646
  %v1682 = vunpack.c.h.b16 %v1646
  %v1683 = vunpack.c.l.b16 %v1647
  %v1684 = vunpack.c.h.b16 %v1647
  %v1685 = vunpack.c.l.b16 %v1648
  %v1686 = vunpack.c.h.b16 %v1648
  %v1687 = vunpack.c.l.b16 %v1649
  %v1688 = vunpack.c.h.b16 %v1649
  %v1689 = vunpack.c.l.b16 %v1650
  %v1690 = vunpack.c.h.b16 %v1650
  %v1691 = vunpack.c.l.b16 %v1651
  %v1692 = vunpack.c.h.b16 %v1651
  %v1693 = vunpack.c.l.b16 %v1652
  %v1694 = vunpack.c.h.b16 %v1652
  %v1695 = vunpack.c.l.b16 %v1653
  %v1696 = vunpack.c.h.b16 %v1653
  %v1697 = vunpack.c.l.b16 %v1654
  %v1698 = vunpack.c.h.b16 %v1654
  %v1699 = vunpack.c.l.b16 %v1655
  %v1700 = vunpack.c.h.b16 %v1655
  %v1701 = vunpack.c.l.b16 %v1656
  %v1702 = vunpack.c.h.b16 %v1656
  %v1703 = vunpack.c.l.b16 %v1657
  %v1704 = vunpack.c.h.b16 %v1657
  %v1705 = vunpack.c.l.b16 %v1658
  %v1706 = vunpack.c.h.b16 %v1658
  %v1707 = vpack.c.b16 %v1675, %v1675
  %v1708 = vpack.c.b16 %v1676, %v1676
  %v1709 = vpack.c.b16 %v1677, %v1677
  %v1710 = vpack.c.b16 %v1678, %v1678
  %v1711 = vpack.c.b16 %v1679, %v1679
  %v1712 = vpack.c.b16 %v1680, %v1680
  %v1713 = vpack.c.b16 %v1681, %v1681
  %v1714 = vpack.c.b16 %v1682, %v1682
  %v1715 = vpack.c.b16 %v1683, %v1683
  %v1716 = vpack.c.b16 %v1684, %v1684
  %v1717 = vpack.c.b16 %v1685, %v1685
  %v1718 = vpack.c.b16 %v1686, %v1686
  %v1719 = vpack.c.b16 %v1687, %v1687
  %v1720 = vpack.c.b16 %v1688, %v1688
  %v1721 = vpack.c.b16 %v1689, %v1689
  %v1722 = vpack.c.b16 %v1690, %v1690
  %v1723 = vpack.c.b16 %v1691, %v1691
  %v1724 = vpack.c.b16 %v1692, %v1692
  %v1725 = vpack.c.b16 %v1693, %v1693
  %v1726 = vpack.c.b16 %v1694, %v1694
  %v1727 = vpack.c.b16 %v1695, %v1695
  %v1728 = vpack.c.b16 %v1696, %v1696
  %v1729 = vpack.c.b16 %v1697, %v1697
  %v1730 = vpack.c.b16 %v1698, %v1698
  %v1731 = vpack.c.b16 %v1699, %v1699
  %v1732 = vpack.c.b16 %v1700, %v1700
  %v1733 = vpack.c.b16 %v1701, %v1701
  %v1734 = vpack.c.b16 %v1702, %v1702
  %v1735 = vpack.c.b16 %v1703, %v1703
  %v1736 = vpack.c.b16 %v1704, %v1704
  %v1737 = vpack.c.b16 %v1705, %v1705
  %v1738 = vpack.c.b16 %v1706, %v1706
  %1771 = vst [vmem:[%s4] sm:$0xf] %v1707
  %1772 = vst [vmem:[%s4 + $0x4] sm:$0xf] %v1708
  %1773 = vst [vmem:[%s4 + $0x8] sm:$0xf] %v1709
  %1774 = vst [vmem:[%s4 + $0xc] sm:$0xf] %v1710
  %1775 = vst [vmem:[%s4 + $0x10] sm:$0xf] %v1711
  %1776 = vst [vmem:[%s4 + $0x14] sm:$0xf] %v1712
  %1777 = vst [vmem:[%s4 + $0x18] sm:$0xf] %v1713
  %1778 = vst [vmem:[%s4 + $0x1c] sm:$0xf] %v1714
  %1779 = vst [vmem:[%s4 + $0x20] sm:$0xf] %v1715
  %1780 = vst [vmem:[%s4 + $0x24] sm:$0xf] %v1716
  %1781 = vst [vmem:[%s4 + $0x28] sm:$0xf] %v1717
  %1782 = vst [vmem:[%s4 + $0x2c] sm:$0xf] %v1718
  %1783 = vst [vmem:[%s4 + $0x30] sm:$0xf] %v1719
  %1784 = vst [vmem:[%s4 + $0x34] sm:$0xf] %v1720
  %1785 = vst [vmem:[%s4 + $0x38] sm:$0xf] %v1721
  %1786 = vst [vmem:[%s4 + $0x3c] sm:$0xf] %v1722
  %1787 = vst [vmem:[%s4 + $0x40] sm:$0xf] %v1723
  %1788 = vst [vmem:[%s4 + $0x44] sm:$0xf] %v1724
  %1789 = vst [vmem:[%s4 + $0x48] sm:$0xf] %v1725
  %1790 = vst [vmem:[%s4 + $0x4c] sm:$0xf] %v1726
  %1791 = vst [vmem:[%s4 + $0x50] sm:$0xf] %v1727
  %1792 = vst [vmem:[%s4 + $0x54] sm:$0xf] %v1728
  %1793 = vst [vmem:[%s4 + $0x58] sm:$0xf] %v1729
  %1794 = vst [vmem:[%s4 + $0x5c] sm:$0xf] %v1730
  %1795 = vst [vmem:[%s4 + $0x60] sm:$0xf] %v1731
  %1796 = vst [vmem:[%s4 + $0x64] sm:$0xf] %v1732
  %1797 = vst [vmem:[%s4 + $0x68] sm:$0xf] %v1733
  %1798 = vst [vmem:[%s4 + $0x6c] sm:$0xf] %v1734
  %1799 = vst [vmem:[%s4 + $0x70] sm:$0xf] %v1735
  %1800 = vst [vmem:[%s4 + $0x74] sm:$0xf] %v1736
  %1801 = vst [vmem:[%s4 + $0x78] sm:$0xf] %v1737
  %1802 = vst [vmem:[%s4 + $0x7c] sm:$0xf] %v1738
  // Predicated region
  $region14: #{pepper_net_multi_inv3_forward.1} parent=0 // pred_check
    _
  $region15: #{pepper_net_multi_inv3_forward.1} parent=0 // pred_check_branch
    %1804 = sbr.rel (0) target = $region17
  $region16: #{pepper_net_multi_inv3_forward.1} parent=0 // pred_region
    _
  $region17: #{pepper_net_multi_inv3_forward.1} parent=0 // pred_fallthru
    _
  // Predicated region
  $region18: #{pepper_net_multi_inv3_forward.1} parent=0 // pred_check
    _
  $region19: #{pepper_net_multi_inv3_forward.1} parent=0 // pred_check_branch
    %1806 = sbr.rel (0) target = $region21
  $region20: #{pepper_net_multi_inv3_forward.1} parent=0 // pred_region
    _
  $region21: #{pepper_net_multi_inv3_forward.1} parent=0 // pred_fallthru
    _

</llo_original>
